<compile_context>
chip_gen: v6e
topology: v6e:2x2x1
jax: 0.10.0
libtpu: 0.0.40
codegen_flags: <defaults>
</compile_context>

<pallas_src>
import functools

import jax
import jax.numpy as jnp
from jax import lax
from jax.experimental import pallas as pl
from jax.experimental.pallas import tpu as pltpu

ALPHA = 1.0
BETA = 1.0
FOCAL_ALPHA = 0.25
FOCAL_GAMMA = 2.0  # module default; implemented as an exact square below


def _round_up(x, m):
    return (x + m - 1) // m * m


def _detection_loss_kernel(logits_ref, tgt_ref, bbox_p_ref, bbox_t_ref, out_ref, *,
                           n_rows, cls_scale, box_scale, transpose_in_kernel):
    """One grid step processes `row_tile` rows and writes one (8,128) partial block.

    transpose_in_kernel=True  (primary, natural HBM layouts):
        logits_ref : (RT, C)   tgt_ref : (1, RT)   bbox_*_ref : (RT, 4)
    transpose_in_kernel=False (fallback, wrapper pre-transposed):
        logits_ref : (C, RT)   tgt_ref : (1, RT)   bbox_*_ref : (4, RT)
    """
    rt = tgt_ref.shape[1]
    base = pl.program_id(0) * rt
    row_ids = base + lax.broadcasted_iota(jnp.int32, (1, rt), 1)
    row_valid = row_ids < n_rows                                        # (1, RT)

    if transpose_in_kernel:
        # Lane-dense relayout on the (otherwise idle) XLU: rows -> lanes,
        # classes / bbox coords -> sublanes.  Upcast first so the transpose is f32.
        logits = jnp.transpose(logits_ref[...].astype(jnp.float32))     # (C, RT)
        d = jnp.transpose(bbox_p_ref[...].astype(jnp.float32)
                          - bbox_t_ref[...].astype(jnp.float32))        # (4, RT)
    else:
        logits = logits_ref[...].astype(jnp.float32)                    # (C, RT)
        d = (bbox_p_ref[...].astype(jnp.float32)
             - bbox_t_ref[...].astype(jnp.float32))                     # (4, RT)

    num_classes = logits.shape[0]

    # ---- focal loss: softmax cross-entropy with classes on the sublane axis -------
    m = jnp.max(logits, axis=0, keepdims=True)                          # (1, RT)
    ex = jnp.exp(logits - m)
    lse = jnp.log(jnp.sum(ex, axis=0, keepdims=True)) + m               # (1, RT)

    tgt = tgt_ref[...]                                                  # (1, RT) int32
    cls_iota = lax.broadcasted_iota(jnp.int32, (num_classes, 1), 0)
    picked = jnp.sum(jnp.where(cls_iota == tgt, logits, 0.0),
                     axis=0, keepdims=True)                             # (1, RT)

    ce = lse - picked
    p_t = jnp.exp(-ce)
    one_m = 1.0 - p_t
    # TODO(synk): targets < 0 (padding / ignore labels) are masked out here; the PyTorch
    # module assumes all targets are valid class indices.
    valid = row_valid & (tgt >= 0)
    focal = jnp.where(valid, one_m * one_m * ce, 0.0)                   # (1 - p_t)**2 * ce
    focal_sum = jnp.sum(focal)

    # ---- smooth L1 on the lane-dense bbox block ------------------------------------
    ad = jnp.abs(d)
    sl1 = jnp.where(ad < 1.0, 0.5 * d * d, ad - 0.5)
    sl1 = jnp.where(row_valid, sl1, 0.0)
    sl1_sum = jnp.sum(sl1)

    # ---- emit this block's partial sum as element [0, 0] of an (8,128) block --------
    total = cls_scale * focal_sum + box_scale * sl1_sum
    sub = lax.broadcasted_iota(jnp.int32, (8, 128), 0)
    lane = lax.broadcasted_iota(jnp.int32, (8, 128), 1)
    out_ref[...] = jnp.where((sub == 0) & (lane == 0), total, 0.0)


def _detection_loss_impl(cls_logits, bbox_preds, cls_targets, bbox_targets,
                         row_tile, transpose_in_kernel):
    B, H, W, C = cls_logits.shape
    N = B * H * W

    logit_bytes = jnp.dtype(cls_logits.dtype).itemsize
    bbox_bytes = jnp.dtype(bbox_preds.dtype).itemsize
    bytes_per_row = C * logit_bytes + 4 + 8 * bbox_bytes   # logits + int32 tgt + 2 bbox arrays

    try:
        vmem_cap = int(pltpu.get_tpu_info().vmem_capacity_bytes)
    except Exception:
        vmem_cap = 64 * 1024 * 1024                        # conservative (v7x per-TC VMEM)

    # Row tile: as large as the double-buffered-input budget allows, but small enough that
    # the single "parallel" grid axis has >= 2 steps (v7x megacore sharding).
    in_budget = max(2 << 20, vmem_cap // 6)
    max_rows = in_budget // (2 * bytes_per_row)
    if max_rows < 128:
        # TODO(synk): tile the class axis (online softmax) for very large C.
        raise ValueError(f"class count C={C} too large for a single VMEM row tile")
    rt = min(int(row_tile), (max_rows // 128) * 128, _round_up(N, 128))
    if N > 128:
        rt = min(rt, _round_up(pl.cdiv(N, 2), 128))
    rt = max(128, (rt // 128) * 128)
    grid = pl.cdiv(N, rt)

    # Free reshapes only -- no pad, no cast, no transpose in the primary path.
    logits2d = cls_logits.reshape(N, C)
    tgt2d = cls_targets.reshape(1, N).astype(jnp.int32)
    preds2d = bbox_preds.reshape(N, 4)
    btgts2d = bbox_targets.reshape(N, 4)

    if transpose_in_kernel:
        in_specs = [
            pl.BlockSpec((rt, C), lambda i: (i, 0)),
            pl.BlockSpec((1, rt), lambda i: (0, i)),
            pl.BlockSpec((rt, 4), lambda i: (i, 0)),
            pl.BlockSpec((rt, 4), lambda i: (i, 0)),
        ]
    else:
        # Fallback: one wrapper-side relayout pass (classes / coords -> leading axis).
        logits2d = logits2d.T                               # (C, N)
        preds2d = preds2d.T                                 # (4, N)
        btgts2d = btgts2d.T
        in_specs = [
            pl.BlockSpec((C, rt), lambda i: (0, i)),
            pl.BlockSpec((1, rt), lambda i: (0, i)),
            pl.BlockSpec((4, rt), lambda i: (0, i)),
            pl.BlockSpec((4, rt), lambda i: (0, i)),
        ]

    kernel = functools.partial(
        _detection_loss_kernel,
        n_rows=N,
        cls_scale=float(ALPHA * FOCAL_ALPHA / N),   # mean over N rows
        box_scale=float(BETA / (4 * N)),            # mean over 4*N bbox elements
        transpose_in_kernel=transpose_in_kernel,
    )

    step_bytes = rt * bytes_per_row
    vmem_limit = int(min(vmem_cap // 2, max(8 << 20, 6 * step_bytes + (2 << 20))))

    partials = pl.pallas_call(
        kernel,
        out_shape=jax.ShapeDtypeStruct((grid * 8, 128), jnp.float32),
        grid_spec=pltpu.PrefetchScalarGridSpec(
            num_scalar_prefetch=0,
            grid=(grid,),
            in_specs=in_specs,
            out_specs=pl.BlockSpec((8, 128), lambda i: (i, 0)),
        ),
        compiler_params=pltpu.CompilerParams(
            dimension_semantics=("parallel",),
            vmem_limit_bytes=vmem_limit,
        ),
    )(logits2d, tgt2d, preds2d, btgts2d)

    # Final reduction of the per-block partial sums in plain JAX (tiny).
    return jnp.sum(partials)


_IN_KERNEL_RELAYOUT_OK = True


def detection_loss(cls_logits, bbox_preds, cls_targets, bbox_targets, *, row_tile=4096):
    """alpha * focal_cls_loss + beta * smooth_l1_bbox_loss (matches the PyTorch module)."""
    global _IN_KERNEL_RELAYOUT_OK
    if _IN_KERNEL_RELAYOUT_OK:
        try:
            return _detection_loss_impl(cls_logits, bbox_preds, cls_targets, bbox_targets,
                                        row_tile, transpose_in_kernel=True)
        except Exception:
            # This Mosaic build could not lower the in-kernel XLU relayout; fall back to a
            # one-time wrapper-side transpose (adds one HBM pass over logits / bboxes).
            # Only effective when called eagerly; under jit the primary path is used.
            _IN_KERNEL_RELAYOUT_OK = False
    return _detection_loss_impl(cls_logits, bbox_preds, cls_targets, bbox_targets,
                                row_tile, transpose_in_kernel=False)


def detection_loss_ref(cls_logits, bbox_preds, cls_targets, bbox_targets):
    """Pure-JAX reference mirroring the PyTorch module."""
    B, H, W, C = cls_logits.shape
    logits = cls_logits.reshape(-1, C).astype(jnp.float32)
    tgts = cls_targets.reshape(-1).astype(jnp.int32)
    lse = jax.nn.logsumexp(logits, axis=-1)
    picked = jnp.take_along_axis(logits, tgts[:, None], axis=-1)[:, 0]
    ce = lse - picked
    p_t = jnp.exp(-ce)
    focal = FOCAL_ALPHA * (1.0 - p_t) ** 2 * ce
    cls_loss = focal.mean()
    d = (bbox_preds.reshape(-1, 4).astype(jnp.float32)
         - bbox_targets.reshape(-1, 4).astype(jnp.float32))
    ad = jnp.abs(d)
    sl1 = jnp.where(ad < 1.0, 0.5 * d * d, ad - 0.5)
    return ALPHA * cls_loss + BETA * sl1.mean()


if __name__ == "__main__":
    root = jax.random.PRNGKey(0)
    key_a, key_b, key_c = jax.random.split(root, 3)

    def make_inputs(key, B, H, W, C, dtype=jnp.float32):
        k1, k2, k3, k4 = jax.random.split(key, 4)
        return (jax.random.normal(k1, (B, H, W, C), dtype=dtype),
                jax.random.normal(k2, (B, H, W, 4), dtype=dtype),
                jax.random.randint(k3, (B, H, W), 0, C, dtype=jnp.int32),
                jax.random.normal(k4, (B, H, W, 4), dtype=dtype))

    # primary small-shape run (N = 512 rows, 8 classes) -> row_tile 256, grid 2
    args = make_inputs(key_a, 2, 16, 16, 8)
    loss = detection_loss(*args)
    jax.block_until_ready(loss)
    ref = detection_loss_ref(*args)
    assert jnp.allclose(loss, ref, rtol=1e-4, atol=1e-5), (loss, ref)

    # non-tile-multiple row count (N = 200) exercises the masked partial last block
    args2 = make_inputs(key_b, 2, 10, 10, 8)
    loss2 = detection_loss(*args2)
    jax.block_until_ready(loss2)
    ref2 = detection_loss_ref(*args2)
    assert jnp.allclose(loss2, ref2, rtol=1e-4, atol=1e-5), (loss2, ref2)

    # bf16 inputs stream to the kernel without a wrapper-side f32 cast
    args3 = make_inputs(key_c, 2, 16, 16, 8, dtype=jnp.bfloat16)
    loss3 = detection_loss(*args3)
    jax.block_until_ready(loss3)
    ref3 = detection_loss_ref(*args3)
    assert jnp.allclose(loss3, ref3, rtol=1e-4, atol=1e-4), (loss3, ref3)

    print("KERNEL_OK")
</pallas_src>

<mosaic_0001>
module attributes {stable_mosaic.version = 11 : i64} {
  func.func @_detection_loss_kernel(%arg0: i32, %arg1: memref<256x8xf32, #tpu.memory_space<vmem>>, %arg2: memref<1x256xi32, #tpu.memory_space<vmem>>, %arg3: memref<256x4xf32, #tpu.memory_space<vmem>>, %arg4: memref<256x4xf32, #tpu.memory_space<vmem>>, %arg5: memref<8x128xf32, #tpu.memory_space<vmem>>) attributes {dimension_semantics = [#tpu.dimension_semantics<parallel>], iteration_bounds = array<i64: 2>, scalar_prefetch = 0 : i64, scratch_operands = 0 : i64, tpu.core_type = #tpu.core_type<tc>, window_params = [{transform_indices = @transform_0, window_bounds = array<i64: 256, 8>}, {transform_indices = @transform_1, window_bounds = array<i64: 1, 256>}, {transform_indices = @transform_2, window_bounds = array<i64: 256, 4>}, {transform_indices = @transform_3, window_bounds = array<i64: 256, 4>}, {transform_indices = @transform_4, window_bounds = array<i64: 8, 128>}]} {
    %c256_i32 = arith.constant 256 : i32
    %0 = arith.muli %arg0, %c256_i32 : i32
    %1 = tpu.iota {dimensions = array<i32: 1>} : vector<1x256xi32>
    %2 = vector.broadcast %0 : i32 to vector<1x256xi32>
    %3 = arith.addi %2, %1 : vector<1x256xi32>
    %c512_i32 = arith.constant 512 : i32
    %4 = vector.broadcast %c512_i32 : i32 to vector<1x256xi32>
    %5 = arith.cmpi slt, %3, %4 : vector<1x256xi32>
    %c0 = arith.constant 0 : index
    %c0_0 = arith.constant 0 : index
    %6 = vector.load %arg1[%c0, %c0_0] : memref<256x8xf32, #tpu.memory_space<vmem>>, vector<256x8xf32>
    %7 = tpu.transpose %6, [1, 0] : vector<256x8xf32> -> vector<8x256xf32>
    %c0_1 = arith.constant 0 : index
    %c0_2 = arith.constant 0 : index
    %8 = vector.load %arg3[%c0_1, %c0_2] : memref<256x4xf32, #tpu.memory_space<vmem>>, vector<256x4xf32>
    %c0_3 = arith.constant 0 : index
    %c0_4 = arith.constant 0 : index
    %9 = vector.load %arg4[%c0_3, %c0_4] : memref<256x4xf32, #tpu.memory_space<vmem>>, vector<256x4xf32>
    %10 = arith.subf %8, %9 : vector<256x4xf32>
    %11 = tpu.transpose %10, [1, 0] : vector<256x4xf32> -> vector<4x256xf32>
    %cst = arith.constant dense<0xFF800000> : vector<256xf32>
    %12 = vector.multi_reduction <maximumf>, %7, %cst [0] : vector<8x256xf32> to vector<256xf32>
    %13 = vector.shape_cast %12 : vector<256xf32> to vector<1x256xf32>
    %14 = vector.broadcast %13 : vector<1x256xf32> to vector<8x256xf32>
    %15 = arith.subf %7, %14 : vector<8x256xf32>
    %16 = math.exp %15 : vector<8x256xf32>
    %cst_5 = arith.constant dense<0.000000e+00> : vector<256xf32>
    %17 = vector.multi_reduction <add>, %16, %cst_5 [0] : vector<8x256xf32> to vector<256xf32>
    %18 = vector.shape_cast %17 : vector<256xf32> to vector<1x256xf32>
    %19 = math.log %18 : vector<1x256xf32>
    %20 = arith.addf %19, %13 : vector<1x256xf32>
    %c0_6 = arith.constant 0 : index
    %c0_7 = arith.constant 0 : index
    %21 = vector.load %arg2[%c0_6, %c0_7] : memref<1x256xi32, #tpu.memory_space<vmem>>, vector<1x256xi32>
    %22 = tpu.iota {dimensions = array<i32: 0>} : vector<8x1xi32>
    %23 = vector.broadcast %22 : vector<8x1xi32> to vector<8x256xi32>
    %24 = vector.broadcast %21 : vector<1x256xi32> to vector<8x256xi32>
    %25 = arith.cmpi eq, %23, %24 : vector<8x256xi32>
    %cst_8 = arith.constant 0.000000e+00 : f32
    %26 = vector.broadcast %cst_8 : f32 to vector<8x256xf32>
    %27 = arith.select %25, %7, %26 : vector<8x256xi1>, vector<8x256xf32>
    %cst_9 = arith.constant dense<0.000000e+00> : vector<256xf32>
    %28 = vector.multi_reduction <add>, %27, %cst_9 [0] : vector<8x256xf32> to vector<256xf32>
    %29 = vector.shape_cast %28 : vector<256xf32> to vector<1x256xf32>
    %30 = arith.subf %20, %29 : vector<1x256xf32>
    %cst_10 = arith.constant 0.000000e+00 : f32
    %31 = vector.broadcast %cst_10 : f32 to vector<1x256xf32>
    %32 = arith.subf %31, %30 : vector<1x256xf32>
    %33 = math.exp %32 : vector<1x256xf32>
    %cst_11 = arith.constant 1.000000e+00 : f32
    %34 = vector.broadcast %cst_11 : f32 to vector<1x256xf32>
    %35 = arith.subf %34, %33 : vector<1x256xf32>
    %c0_i32 = arith.constant 0 : i32
    %36 = vector.broadcast %c0_i32 : i32 to vector<1x256xi32>
    %37 = arith.cmpi sge, %21, %36 : vector<1x256xi32>
    %38 = arith.andi %5, %37 : vector<1x256xi1>
    %39 = arith.mulf %35, %35 : vector<1x256xf32>
    %40 = arith.mulf %39, %30 : vector<1x256xf32>
    %cst_12 = arith.constant 0.000000e+00 : f32
    %41 = vector.broadcast %cst_12 : f32 to vector<1x256xf32>
    %42 = arith.select %38, %40, %41 : vector<1x256xi1>, vector<1x256xf32>
    %43 = vector.shape_cast %42 : vector<1x256xf32> to vector<1x1x256xf32>
    %cst_13 = arith.constant dense<0.000000e+00> : vector<1xf32>
    %44 = vector.multi_reduction <add>, %43, %cst_13 [1, 2] : vector<1x1x256xf32> to vector<1xf32>
    %45 = vector.shape_cast %44 : vector<1xf32> to vector<1x1x1xf32>
    %46 = vector.extract %45[0, 0, 0] : f32 from vector<1x1x1xf32>
    %47 = math.absf %11 : vector<4x256xf32>
    %cst_14 = arith.constant 1.000000e+00 : f32
    %48 = vector.broadcast %cst_14 : f32 to vector<4x256xf32>
    %49 = arith.cmpf olt, %47, %48 : vector<4x256xf32>
    %cst_15 = arith.constant 5.000000e-01 : f32
    %50 = vector.broadcast %cst_15 : f32 to vector<4x256xf32>
    %51 = arith.mulf %50, %11 : vector<4x256xf32>
    %52 = arith.mulf %51, %11 : vector<4x256xf32>
    %cst_16 = arith.constant 5.000000e-01 : f32
    %53 = vector.broadcast %cst_16 : f32 to vector<4x256xf32>
    %54 = arith.subf %47, %53 : vector<4x256xf32>
    %55 = arith.select %49, %52, %54 : vector<4x256xi1>, vector<4x256xf32>
    %cst_17 = arith.constant 0.000000e+00 : f32
    %56 = vector.shape_cast %5 : vector<1x256xi1> to vector<1x256xi1>
    %57 = vector.broadcast %56 : vector<1x256xi1> to vector<4x256xi1>
    %58 = vector.broadcast %cst_17 : f32 to vector<4x256xf32>
    %59 = arith.select %57, %55, %58 : vector<4x256xi1>, vector<4x256xf32>
    %60 = vector.shape_cast %59 : vector<4x256xf32> to vector<1x4x256xf32>
    %cst_18 = arith.constant dense<0.000000e+00> : vector<1xf32>
    %61 = vector.multi_reduction <add>, %60, %cst_18 [1, 2] : vector<1x4x256xf32> to vector<1xf32>
    %62 = vector.shape_cast %61 : vector<1xf32> to vector<1x1x1xf32>
    %63 = vector.extract %62[0, 0, 0] : f32 from vector<1x1x1xf32>
    %cst_19 = arith.constant 4.8828125E-4 : f32
    %64 = arith.mulf %cst_19, %46 : f32
    %cst_20 = arith.constant 4.8828125E-4 : f32
    %65 = arith.mulf %cst_20, %63 : f32
    %66 = arith.addf %64, %65 : f32
    %67 = tpu.iota {dimensions = array<i32: 0>} : vector<8x128xi32>
    %68 = tpu.iota {dimensions = array<i32: 1>} : vector<8x128xi32>
    %c0_i32_21 = arith.constant 0 : i32
    %69 = vector.broadcast %c0_i32_21 : i32 to vector<8x128xi32>
    %70 = arith.cmpi eq, %67, %69 : vector<8x128xi32>
    %c0_i32_22 = arith.constant 0 : i32
    %71 = vector.broadcast %c0_i32_22 : i32 to vector<8x128xi32>
    %72 = arith.cmpi eq, %68, %71 : vector<8x128xi32>
    %73 = arith.andi %70, %72 : vector<8x128xi1>
    %cst_23 = arith.constant 0.000000e+00 : f32
    %74 = vector.broadcast %66 : f32 to vector<8x128xf32>
    %75 = vector.broadcast %cst_23 : f32 to vector<8x128xf32>
    %76 = arith.select %73, %74, %75 : vector<8x128xi1>, vector<8x128xf32>
    %c0_24 = arith.constant 0 : index
    %c0_25 = arith.constant 0 : index
    %77 = vector.load %arg5[%c0_24, %c0_25] : memref<8x128xf32, #tpu.memory_space<vmem>>, vector<8x128xf32>
    tpu.vector_store %arg5[%c0_24, %c0_25], %76 {strides = array<i32>} : memref<8x128xf32, #tpu.memory_space<vmem>>, vector<8x128xf32>,
    return
  }
  func.func @transform_0(%arg0: i32) -> (i32, i32) {
    %c0_i32 = arith.constant 0 : i32
    %c0_i32_0 = arith.constant 0 : i32
    return %arg0, %c0_i32 : i32, i32
  }
  func.func @transform_1(%arg0: i32) -> (i32, i32) {
    %c0_i32 = arith.constant 0 : i32
    %c0_i32_0 = arith.constant 0 : i32
    return %c0_i32, %arg0 : i32, i32
  }
  func.func @transform_2(%arg0: i32) -> (i32, i32) {
    %c0_i32 = arith.constant 0 : i32
    %c0_i32_0 = arith.constant 0 : i32
    return %arg0, %c0_i32 : i32, i32
  }
  func.func @transform_3(%arg0: i32) -> (i32, i32) {
    %c0_i32 = arith.constant 0 : i32
    %c0_i32_0 = arith.constant 0 : i32
    return %arg0, %c0_i32 : i32, i32
  }
  func.func @transform_4(%arg0: i32) -> (i32, i32) {
    %c0_i32 = arith.constant 0 : i32
    %c0_i32_0 = arith.constant 0 : i32
    return %arg0, %c0_i32 : i32, i32
  }
}

module attributes {stable_mosaic.version = 11 : i64} {
  func.func @_detection_loss_kernel(%arg0: i32, %arg1: memref<8x256xf32, #tpu.memory_space<vmem>>, %arg2: memref<1x256xi32, #tpu.memory_space<vmem>>, %arg3: memref<4x256xf32, #tpu.memory_space<vmem>>, %arg4: memref<4x256xf32, #tpu.memory_space<vmem>>, %arg5: memref<8x128xf32, #tpu.memory_space<vmem>>) attributes {dimension_semantics = [#tpu.dimension_semantics<parallel>], iteration_bounds = array<i64: 2>, scalar_prefetch = 0 : i64, scratch_operands = 0 : i64, tpu.core_type = #tpu.core_type<tc>, window_params = [{transform_indices = @transform_0, window_bounds = array<i64: 8, 256>}, {transform_indices = @transform_1, window_bounds = array<i64: 1, 256>}, {transform_indices = @transform_2, window_bounds = array<i64: 4, 256>}, {transform_indices = @transform_3, window_bounds = array<i64: 4, 256>}, {transform_indices = @transform_4, window_bounds = array<i64: 8, 128>}]} {
    %c256_i32 = arith.constant 256 : i32
    %0 = arith.muli %arg0, %c256_i32 : i32
    %1 = tpu.iota {dimensions = array<i32: 1>} : vector<1x256xi32>
    %2 = vector.broadcast %0 : i32 to vector<1x256xi32>
    %3 = arith.addi %2, %1 : vector<1x256xi32>
    %c512_i32 = arith.constant 512 : i32
    %4 = vector.broadcast %c512_i32 : i32 to vector<1x256xi32>
    %5 = arith.cmpi slt, %3, %4 : vector<1x256xi32>
    %c0 = arith.constant 0 : index
    %c0_0 = arith.constant 0 : index
    %6 = vector.load %arg1[%c0, %c0_0] : memref<8x256xf32, #tpu.memory_space<vmem>>, vector<8x256xf32>
    %c0_1 = arith.constant 0 : index
    %c0_2 = arith.constant 0 : index
    %7 = vector.load %arg3[%c0_1, %c0_2] : memref<4x256xf32, #tpu.memory_space<vmem>>, vector<4x256xf32>
    %c0_3 = arith.constant 0 : index
    %c0_4 = arith.constant 0 : index
    %8 = vector.load %arg4[%c0_3, %c0_4] : memref<4x256xf32, #tpu.memory_space<vmem>>, vector<4x256xf32>
    %9 = arith.subf %7, %8 : vector<4x256xf32>
    %cst = arith.constant dense<0xFF800000> : vector<256xf32>
    %10 = vector.multi_reduction <maximumf>, %6, %cst [0] : vector<8x256xf32> to vector<256xf32>
    %11 = vector.shape_cast %10 : vector<256xf32> to vector<1x256xf32>
    %12 = vector.broadcast %11 : vector<1x256xf32> to vector<8x256xf32>
    %13 = arith.subf %6, %12 : vector<8x256xf32>
    %14 = math.exp %13 : vector<8x256xf32>
    %cst_5 = arith.constant dense<0.000000e+00> : vector<256xf32>
    %15 = vector.multi_reduction <add>, %14, %cst_5 [0] : vector<8x256xf32> to vector<256xf32>
    %16 = vector.shape_cast %15 : vector<256xf32> to vector<1x256xf32>
    %17 = math.log %16 : vector<1x256xf32>
    %18 = arith.addf %17, %11 : vector<1x256xf32>
    %c0_6 = arith.constant 0 : index
    %c0_7 = arith.constant 0 : index
    %19 = vector.load %arg2[%c0_6, %c0_7] : memref<1x256xi32, #tpu.memory_space<vmem>>, vector<1x256xi32>
    %20 = tpu.iota {dimensions = array<i32: 0>} : vector<8x1xi32>
    %21 = vector.broadcast %20 : vector<8x1xi32> to vector<8x256xi32>
    %22 = vector.broadcast %19 : vector<1x256xi32> to vector<8x256xi32>
    %23 = arith.cmpi eq, %21, %22 : vector<8x256xi32>
    %cst_8 = arith.constant 0.000000e+00 : f32
    %24 = vector.broadcast %cst_8 : f32 to vector<8x256xf32>
    %25 = arith.select %23, %6, %24 : vector<8x256xi1>, vector<8x256xf32>
    %cst_9 = arith.constant dense<0.000000e+00> : vector<256xf32>
    %26 = vector.multi_reduction <add>, %25, %cst_9 [0] : vector<8x256xf32> to vector<256xf32>
    %27 = vector.shape_cast %26 : vector<256xf32> to vector<1x256xf32>
    %28 = arith.subf %18, %27 : vector<1x256xf32>
    %cst_10 = arith.constant 0.000000e+00 : f32
    %29 = vector.broadcast %cst_10 : f32 to vector<1x256xf32>
    %30 = arith.subf %29, %28 : vector<1x256xf32>
    %31 = math.exp %30 : vector<1x256xf32>
    %cst_11 = arith.constant 1.000000e+00 : f32
    %32 = vector.broadcast %cst_11 : f32 to vector<1x256xf32>
    %33 = arith.subf %32, %31 : vector<1x256xf32>
    %c0_i32 = arith.constant 0 : i32
    %34 = vector.broadcast %c0_i32 : i32 to vector<1x256xi32>
    %35 = arith.cmpi sge, %19, %34 : vector<1x256xi32>
    %36 = arith.andi %5, %35 : vector<1x256xi1>
    %37 = arith.mulf %33, %33 : vector<1x256xf32>
    %38 = arith.mulf %37, %28 : vector<1x256xf32>
    %cst_12 = arith.constant 0.000000e+00 : f32
    %39 = vector.broadcast %cst_12 : f32 to vector<1x256xf32>
    %40 = arith.select %36, %38, %39 : vector<1x256xi1>, vector<1x256xf32>
    %41 = vector.shape_cast %40 : vector<1x256xf32> to vector<1x1x256xf32>
    %cst_13 = arith.constant dense<0.000000e+00> : vector<1xf32>
    %42 = vector.multi_reduction <add>, %41, %cst_13 [1, 2] : vector<1x1x256xf32> to vector<1xf32>
    %43 = vector.shape_cast %42 : vector<1xf32> to vector<1x1x1xf32>
    %44 = vector.extract %43[0, 0, 0] : f32 from vector<1x1x1xf32>
    %45 = math.absf %9 : vector<4x256xf32>
    %cst_14 = arith.constant 1.000000e+00 : f32
    %46 = vector.broadcast %cst_14 : f32 to vector<4x256xf32>
    %47 = arith.cmpf olt, %45, %46 : vector<4x256xf32>
    %cst_15 = arith.constant 5.000000e-01 : f32
    %48 = vector.broadcast %cst_15 : f32 to vector<4x256xf32>
    %49 = arith.mulf %48, %9 : vector<4x256xf32>
    %50 = arith.mulf %49, %9 : vector<4x256xf32>
    %cst_16 = arith.constant 5.000000e-01 : f32
    %51 = vector.broadcast %cst_16 : f32 to vector<4x256xf32>
    %52 = arith.subf %45, %51 : vector<4x256xf32>
    %53 = arith.select %47, %50, %52 : vector<4x256xi1>, vector<4x256xf32>
    %cst_17 = arith.constant 0.000000e+00 : f32
    %54 = vector.shape_cast %5 : vector<1x256xi1> to vector<1x256xi1>
    %55 = vector.broadcast %54 : vector<1x256xi1> to vector<4x256xi1>
    %56 = vector.broadcast %cst_17 : f32 to vector<4x256xf32>
    %57 = arith.select %55, %53, %56 : vector<4x256xi1>, vector<4x256xf32>
    %58 = vector.shape_cast %57 : vector<4x256xf32> to vector<1x4x256xf32>
    %cst_18 = arith.constant dense<0.000000e+00> : vector<1xf32>
    %59 = vector.multi_reduction <add>, %58, %cst_18 [1, 2] : vector<1x4x256xf32> to vector<1xf32>
    %60 = vector.shape_cast %59 : vector<1xf32> to vector<1x1x1xf32>
    %61 = vector.extract %60[0, 0, 0] : f32 from vector<1x1x1xf32>
    %cst_19 = arith.constant 4.8828125E-4 : f32
    %62 = arith.mulf %cst_19, %44 : f32
    %cst_20 = arith.constant 4.8828125E-4 : f32
    %63 = arith.mulf %cst_20, %61 : f32
    %64 = arith.addf %62, %63 : f32
    %65 = tpu.iota {dimensions = array<i32: 0>} : vector<8x128xi32>
    %66 = tpu.iota {dimensions = array<i32: 1>} : vector<8x128xi32>
    %c0_i32_21 = arith.constant 0 : i32
    %67 = vector.broadcast %c0_i32_21 : i32 to vector<8x128xi32>
    %68 = arith.cmpi eq, %65, %67 : vector<8x128xi32>
    %c0_i32_22 = arith.constant 0 : i32
    %69 = vector.broadcast %c0_i32_22 : i32 to vector<8x128xi32>
    %70 = arith.cmpi eq, %66, %69 : vector<8x128xi32>
    %71 = arith.andi %68, %70 : vector<8x128xi1>
    %cst_23 = arith.constant 0.000000e+00 : f32
    %72 = vector.broadcast %64 : f32 to vector<8x128xf32>
    %73 = vector.broadcast %cst_23 : f32 to vector<8x128xf32>
    %74 = arith.select %71, %72, %73 : vector<8x128xi1>, vector<8x128xf32>
    %c0_24 = arith.constant 0 : index
    %c0_25 = arith.constant 0 : index
    %75 = vector.load %arg5[%c0_24, %c0_25] : memref<8x128xf32, #tpu.memory_space<vmem>>, vector<8x128xf32>
    tpu.vector_store %arg5[%c0_24, %c0_25], %74 {strides = array<i32>} : memref<8x128xf32, #tpu.memory_space<vmem>>, vector<8x128xf32>,
    return
  }
  func.func @transform_0(%arg0: i32) -> (i32, i32) {
    %c0_i32 = arith.constant 0 : i32
    %c0_i32_0 = arith.constant 0 : i32
    return %c0_i32, %arg0 : i32, i32
  }
  func.func @transform_1(%arg0: i32) -> (i32, i32) {
    %c0_i32 = arith.constant 0 : i32
    %c0_i32_0 = arith.constant 0 : i32
    return %c0_i32, %arg0 : i32, i32
  }
  func.func @transform_2(%arg0: i32) -> (i32, i32) {
    %c0_i32 = arith.constant 0 : i32
    %c0_i32_0 = arith.constant 0 : i32
    return %c0_i32, %arg0 : i32, i32
  }
  func.func @transform_3(%arg0: i32) -> (i32, i32) {
    %c0_i32 = arith.constant 0 : i32
    %c0_i32_0 = arith.constant 0 : i32
    return %c0_i32, %arg0 : i32, i32
  }
  func.func @transform_4(%arg0: i32) -> (i32, i32) {
    %c0_i32 = arith.constant 0 : i32
    %c0_i32_0 = arith.constant 0 : i32
    return %arg0, %c0_i32 : i32, i32
  }
}

</mosaic_0001>

<llo_original>
// kernel: tpu_custom_call.1
$region0: #{tpu_custom_call.1}
  #allocation0 [shape = 'u32[]', space=smem, size = 0x4, offset = 0x4, fixed_abs, tag = 'smem constant byte address 0x4 - core index']
  #allocation1 [shape = 'u32[144,128]{1,0:T(1,128)}', space=vmem, size = 0x12000, scoped, tag = 'internal scratch']
  %s0 = inlined_call_operand.vmem [shape: f32[512,8], index: 0, kind: input, shape index: {}]
  %s1 = inlined_call_operand.vmem [shape: s32[1,512], index: 1, kind: input, shape index: {}]
  %s2 = inlined_call_operand.vmem [shape: f32[512,4], index: 2, kind: input, shape index: {}]
  %s3 = inlined_call_operand.vmem [shape: f32[512,4], index: 3, kind: input, shape index: {}]
  %s4 = inlined_call_operand.hbm [shape: f32[16,128], index: 4, kind: output, shape index: {}]
  %s5 = sld [smem:[#allocation0]]
  $region49: #{tpu_custom_call.1} parent=0
    _
  %s7 = ssub.s32 1, %s5
  %s8 = scalar_select 0, %s7, %s5
  $region1: #{tpu_custom_call.1} parent=0
    #allocation2 [shape = 'u8[8192]{0}', space=vmem, size = 0x2000, scoped, tag = 'output window, operand 0']
    #allocation3 [shape = 's32[2]{0}', space=sflag, size = 0x8, scoped, tag = 'scoped memory for tpu_custom_call.1']
    %9 = vsyncpa [#allocation3], 0
    %s10 = scalar_lea.sflag [#allocation3], 1
    %11 = vsyncpa %s10, 0
    loop: start=0, step=1, limit=4
    $region2: #{tpu_custom_call.1} parent=1 // loop_pre_header
      _
    $region3: #{tpu_custom_call.1} parent=1 // loop_header
      %s13 = sphi 0, %s17
      %p14 = scmp.ge.s32.totalorder %s13, 4
      %s23 = sphi 0, %s25
      %s26 = sphi 0, %s23
      %s27 = sphi 0, %s26
      %s43 = sphi 0, %s27
      %s49 = sphi 0, %s51
      %s52 = sphi 0, %s49
      %s53 = sphi 0, %s52
      %s69 = sphi 0, %s53
      %s75 = sphi 0, %s77
      %s78 = sphi 0, %s75
      %s79 = sphi 0, %s78
      %s95 = sphi 0, %s79
      %s101 = sphi 0, %s103
      %s104 = sphi 0, %s101
      %s105 = sphi 0, %s104
      %s121 = sphi 0, %s105
      %s127 = sphi 0, %s129
      %s130 = sphi 0, %s127
      %s131 = sphi 0, %s130
      %s147 = sphi 0, %s131
    $region4: #{tpu_custom_call.1} parent=1 // loop_header_branch
      %16 = sbr.rel (%p14) target = $region8
    $region5: #{tpu_custom_call.1} parent=1 // loop_body
      %s18 = ssub.s32 %s13, 1
      %s19 = ssub.s32 %s13, 2
      %s20 = sadd.s32 %s13, 1
      %s21 = ssub.s32 %s13, %s20
      %p22 = scmp.eq.s32.totalorder %s21, 0
      %s24 = sadd.s32 %s23, 1
      %s25 = scalar_select %p22, %s23, %s24
      %p28 = pneg %p22
      %p29 = scmp.eq.s32.totalorder %s13, 1
      %p30 = por %p28, %p29
      %p31 = scmp.ne.s32.totalorder %s23, %s26
      %p32 = scmp.eq.s32.totalorder %s13, 0
      %p33 = por %p31, %p32
      %p34 = scmp.ne.s32.totalorder %s23, %s26
      %p35 = scmp.eq.s32.totalorder %s18, 1
      %p36 = por %p34, %p35
      %p37 = scmp.ne.s32.totalorder %s26, %s27
      %p38 = scmp.eq.s32.totalorder %s18, 0
      %p39 = por %p37, %p38
      %p40 = scmp.ne.s32.totalorder %s26, %s27
      %p41 = scmp.eq.s32.totalorder %s19, 1
      %p42 = por %p40, %p41
      %p44 = scmp.ne.s32.totalorder %s27, %s43
      %p45 = scmp.eq.s32.totalorder %s19, 0
      %p46 = por %p44, %p45
      %s47 = ssub.s32 %s13, %s20
      %p48 = scmp.eq.s32.totalorder %s47, 0
      %s50 = sadd.s32 %s49, 1
      %s51 = scalar_select %p48, %s49, %s50
      %p54 = pneg %p48
      %p55 = scmp.eq.s32.totalorder %s13, 1
      %p56 = por %p54, %p55
      %p57 = scmp.ne.s32.totalorder %s49, %s52
      %p58 = scmp.eq.s32.totalorder %s13, 0
      %p59 = por %p57, %p58
      %p60 = scmp.ne.s32.totalorder %s49, %s52
      %p61 = scmp.eq.s32.totalorder %s18, 1
      %p62 = por %p60, %p61
      %p63 = scmp.ne.s32.totalorder %s52, %s53
      %p64 = scmp.eq.s32.totalorder %s18, 0
      %p65 = por %p63, %p64
      %p66 = scmp.ne.s32.totalorder %s52, %s53
      %p67 = scmp.eq.s32.totalorder %s19, 1
      %p68 = por %p66, %p67
      %p70 = scmp.ne.s32.totalorder %s53, %s69
      %p71 = scmp.eq.s32.totalorder %s19, 0
      %p72 = por %p70, %p71
      %s73 = ssub.s32 %s13, %s20
      %p74 = scmp.eq.s32.totalorder %s73, 0
      %s76 = sadd.s32 %s75, 1
      %s77 = scalar_select %p74, %s75, %s76
      %p80 = pneg %p74
      %p81 = scmp.eq.s32.totalorder %s13, 1
      %p82 = por %p80, %p81
      %p83 = scmp.ne.s32.totalorder %s75, %s78
      %p84 = scmp.eq.s32.totalorder %s13, 0
      %p85 = por %p83, %p84
      %p86 = scmp.ne.s32.totalorder %s75, %s78
      %p87 = scmp.eq.s32.totalorder %s18, 1
      %p88 = por %p86, %p87
      %p89 = scmp.ne.s32.totalorder %s78, %s79
      %p90 = scmp.eq.s32.totalorder %s18, 0
      %p91 = por %p89, %p90
      %p92 = scmp.ne.s32.totalorder %s78, %s79
      %p93 = scmp.eq.s32.totalorder %s19, 1
      %p94 = por %p92, %p93
      %p96 = scmp.ne.s32.totalorder %s79, %s95
      %p97 = scmp.eq.s32.totalorder %s19, 0
      %p98 = por %p96, %p97
      %s99 = ssub.s32 %s13, %s20
      %p100 = scmp.eq.s32.totalorder %s99, 0
      %s102 = sadd.s32 %s101, 1
      %s103 = scalar_select %p100, %s101, %s102
      %p106 = pneg %p100
      %p107 = scmp.eq.s32.totalorder %s13, 1
      %p108 = por %p106, %p107
      %p109 = scmp.ne.s32.totalorder %s101, %s104
      %p110 = scmp.eq.s32.totalorder %s13, 0
      %p111 = por %p109, %p110
      %p112 = scmp.ne.s32.totalorder %s101, %s104
      %p113 = scmp.eq.s32.totalorder %s18, 1
      %p114 = por %p112, %p113
      %p115 = scmp.ne.s32.totalorder %s104, %s105
      %p116 = scmp.eq.s32.totalorder %s18, 0
      %p117 = por %p115, %p116
      %p118 = scmp.ne.s32.totalorder %s104, %s105
      %p119 = scmp.eq.s32.totalorder %s19, 1
      %p120 = por %p118, %p119
      %p122 = scmp.ne.s32.totalorder %s105, %s121
      %p123 = scmp.eq.s32.totalorder %s19, 0
      %p124 = por %p122, %p123
      %s125 = ssub.s32 %s13, %s20
      %p126 = scmp.eq.s32.totalorder %s125, 0
      %s128 = sadd.s32 %s127, 1
      %s129 = scalar_select %p126, %s127, %s128
      %p132 = pneg %p126
      %p133 = scmp.eq.s32.totalorder %s13, 1
      %p134 = por %p132, %p133
      %p135 = scmp.ne.s32.totalorder %s127, %s130
      %p136 = scmp.eq.s32.totalorder %s13, 0
      %p137 = por %p135, %p136
      %p138 = scmp.ne.s32.totalorder %s127, %s130
      %p139 = scmp.eq.s32.totalorder %s18, 1
      %p140 = por %p138, %p139
      %p141 = scmp.ne.s32.totalorder %s130, %s131
      %p142 = scmp.eq.s32.totalorder %s18, 0
      %p143 = por %p141, %p142
      %p144 = scmp.ne.s32.totalorder %s130, %s131
      %p145 = scmp.eq.s32.totalorder %s19, 1
      %p146 = por %p144, %p145
      %p148 = scmp.ne.s32.totalorder %s131, %s147
      %p149 = scmp.eq.s32.totalorder %s19, 0
      %p150 = por %p148, %p149
      %p151 = scmp.le.s32.totalorder 1, %s13
      %p152 = scmp.lt.s32.totalorder %s13, 3
      %p153 = pnand %p151, %p152
      %p154 = pneg %p153
      // Predicated region
      $region9: #{tpu_custom_call.1} parent=5 // pred_check
        _
      $region10: #{tpu_custom_call.1} parent=5 // pred_check_branch
        %156 = sbr.rel (%p153) target = $region12
      $region11: #{tpu_custom_call.1} parent=5 // pred_region
        %s157 = ssub.s32 %s13, 1
      $region12: #{tpu_custom_call.1} parent=5 // pred_fallthru
        _
      %p158 = scmp.lt.s32.totalorder %s13, 2
      // Predicated region
      $region13: #{tpu_custom_call.1} parent=5 // pred_check
        %p159 = pneg %p158
      $region14: #{tpu_custom_call.1} parent=5 // pred_check_branch
        %161 = sbr.rel (%p159) target = $region16
      $region15: #{tpu_custom_call.1} parent=5 // pred_region
        // Predicated region
        $region17: #{tpu_custom_call.1} parent=15 // pred_check
          %p162 = pneg %p33
        $region18: #{tpu_custom_call.1} parent=15 // pred_check_branch
          %164 = sbr.rel (%p162) target = $region20
        $region19: #{tpu_custom_call.1} parent=15 // pred_region
          %s165 = smul.u32 32, %s13
          %p166 = scmp.lt.s32.totalorder %s165, 63
          %s167 = scalar_select %p166, %s165, 63
          %s168 = smul.addr %s167, 8
          %s169 = scalar_lea.vmem %s0, %s168
          %s170 = smul.u32 32, %s13
        $region20: #{tpu_custom_call.1} parent=15 // pred_fallthru
          _
        // Predicated region
        $region21: #{tpu_custom_call.1} parent=15 // pred_check
          %p171 = pneg %p59
        $region22: #{tpu_custom_call.1} parent=15 // pred_check_branch
          %173 = sbr.rel (%p171) target = $region24
        $region23: #{tpu_custom_call.1} parent=15 // pred_region
          %s174 = smul.u32 2, %s13
          %p175 = scmp.lt.s32.totalorder %s174, 3
          %s176 = scalar_select %p175, %s174, 3
          %s177 = scalar_lea.vmem %s1, %s176
          %s178 = smul.u32 2, %s13
        $region24: #{tpu_custom_call.1} parent=15 // pred_fallthru
          _
        // Predicated region
        $region25: #{tpu_custom_call.1} parent=15 // pred_check
          %p179 = pneg %p85
        $region26: #{tpu_custom_call.1} parent=15 // pred_check_branch
          %181 = sbr.rel (%p179) target = $region28
        $region27: #{tpu_custom_call.1} parent=15 // pred_region
          %s182 = smul.u32 32, %s13
          %p183 = scmp.lt.s32.totalorder %s182, 63
          %s184 = scalar_select %p183, %s182, 63
          %s185 = smul.addr %s184, 8
          %s186 = scalar_lea.vmem %s2, %s185
          %s187 = smul.u32 32, %s13
        $region28: #{tpu_custom_call.1} parent=15 // pred_fallthru
          _
        // Predicated region
        $region29: #{tpu_custom_call.1} parent=15 // pred_check
          %p188 = pneg %p111
        $region30: #{tpu_custom_call.1} parent=15 // pred_check_branch
          %190 = sbr.rel (%p188) target = $region32
        $region31: #{tpu_custom_call.1} parent=15 // pred_region
          %s191 = smul.u32 32, %s13
          %p192 = scmp.lt.s32.totalorder %s191, 63
          %s193 = scalar_select %p192, %s191, 63
          %s194 = smul.addr %s193, 8
          %s195 = scalar_lea.vmem %s3, %s194
          %s196 = smul.u32 32, %s13
        $region32: #{tpu_custom_call.1} parent=15 // pred_fallthru
          _
      $region16: #{tpu_custom_call.1} parent=5 // pred_fallthru
        _
      %p197 = scmp.le.s32.totalorder 1, %s13
      %p198 = scmp.lt.s32.totalorder %s13, 3
      %p199 = pnand %p197, %p198
      %p200 = pneg %p199
      // Predicated region
      $region33: #{tpu_custom_call.1} parent=5 // pred_check
        _
      $region34: #{tpu_custom_call.1} parent=5 // pred_check_branch
        %202 = sbr.rel (%p199) target = $region36
      $region35: #{tpu_custom_call.1} parent=5 // pred_region
        %s203 = ssub.s32 %s13, 1
        %s204 = smul.u32 32, %s18
        %p205 = scmp.lt.s32.totalorder %s204, 63
        %s206 = scalar_select %p205, %s204, 63
        %s207 = smul.addr %s206, 8
        %s208 = scalar_lea.vmem %s0, %s207
        %p209 = pneg %p39
        %p210 = pneg %p36
        %s211 = smul.u32 2, %s18
        %p212 = scmp.lt.s32.totalorder %s211, 3
        %s213 = scalar_select %p212, %s211, 3
        %s214 = scalar_lea.vmem %s1, %s213
        %p215 = pneg %p65
        %p216 = pneg %p62
        %s217 = smul.u32 32, %s18
        %p218 = scmp.lt.s32.totalorder %s217, 63
        %s219 = scalar_select %p218, %s217, 63
        %s220 = smul.addr %s219, 8
        %s221 = scalar_lea.vmem %s2, %s220
        %p222 = pneg %p91
        %p223 = pneg %p88
        %s224 = smul.u32 32, %s18
        %p225 = scmp.lt.s32.totalorder %s224, 63
        %s226 = scalar_select %p225, %s224, 63
        %s227 = smul.addr %s226, 8
        %s228 = scalar_lea.vmem %s3, %s227
        %p229 = pneg %p117
        %p230 = pneg %p114
        %p231 = pneg %p143
        %p232 = pneg %p140
        %s233 = sand.u32 %s130, 1
        %s234 = scalar_lea.sflag [#allocation3], %s233
        %s235 = sand.u32 %s130, 1
        %s236 = smul.addr %s235, 8
        %s237 = scalar_lea.vmem [#allocation2], %s236
        %s238 = smul.u32 32, %s18
        %p239 = scmp.lt.s32.totalorder %s238, 63
        %s240 = scalar_select %p239, %s238, 63
        %s241 = smul.addr %s240, 8
        %s242 = scalar_lea.vmem %s0, %s241
        %s243 = smul.u32 32, %s18
        %s244 = smul.u32 2, %s18
        %p245 = scmp.lt.s32.totalorder %s244, 3
        %s246 = scalar_select %p245, %s244, 3
        %s247 = scalar_lea.vmem %s1, %s246
        %s248 = smul.u32 2, %s18
        %s249 = smul.u32 32, %s18
        %p250 = scmp.lt.s32.totalorder %s249, 63
        %s251 = scalar_select %p250, %s249, 63
        %s252 = smul.addr %s251, 8
        %s253 = scalar_lea.vmem %s2, %s252
        %s254 = smul.u32 32, %s18
        %s255 = smul.u32 32, %s18
        %p256 = scmp.lt.s32.totalorder %s255, 63
        %s257 = scalar_select %p256, %s255, 63
        %s258 = smul.addr %s257, 8
        %s259 = scalar_lea.vmem %s3, %s258
        %s260 = smul.u32 32, %s18
        %s261 = smul.u32 %s18, 256
        %v262 = vlaneseq
        %v263 = vand.u32 %v262, 127
        %v264 = vadd.s32 %v263, 128
        %v265 = vstv %s261
        %v266 = vadd.s32 %v265, %v263
        %v267 = vadd.s32 %v265, %v264
        %vm268 = vcmp.lt.s32.totalorder %v266, 512
        %vm269 = vcmp.lt.s32.totalorder %v267, 512
        %v270 = vld [vmem:[%s242] sm:$0xff]
        %v271 = vld [vmem:[%s242 + $0x8] sm:$0xff]
        %v272 = vld [vmem:[%s242 + $0x10] sm:$0xff]
        %v273 = vld [vmem:[%s242 + $0x18] sm:$0xff]
        %v274 = vld [vmem:[%s242 + $0x20] sm:$0xff]
        %v275 = vld [vmem:[%s242 + $0x28] sm:$0xff]
        %v276 = vld [vmem:[%s242 + $0x30] sm:$0xff]
        %v277 = vld [vmem:[%s242 + $0x38] sm:$0xff]
        %v278 = vld [vmem:[%s242 + $0x40] sm:$0xff]
        %v279 = vld [vmem:[%s242 + $0x48] sm:$0xff]
        %v280 = vld [vmem:[%s242 + $0x50] sm:$0xff]
        %v281 = vld [vmem:[%s242 + $0x58] sm:$0xff]
        %v282 = vld [vmem:[%s242 + $0x60] sm:$0xff]
        %v283 = vld [vmem:[%s242 + $0x68] sm:$0xff]
        %v284 = vld [vmem:[%s242 + $0x70] sm:$0xff]
        %v285 = vld [vmem:[%s242 + $0x78] sm:$0xff]
        %v286 = vld [vmem:[%s242 + $0x80] sm:$0xff]
        %v287 = vld [vmem:[%s242 + $0x88] sm:$0xff]
        %v288 = vld [vmem:[%s242 + $0x90] sm:$0xff]
        %v289 = vld [vmem:[%s242 + $0x98] sm:$0xff]
        %v290 = vld [vmem:[%s242 + $0xa0] sm:$0xff]
        %v291 = vld [vmem:[%s242 + $0xa8] sm:$0xff]
        %v292 = vld [vmem:[%s242 + $0xb0] sm:$0xff]
        %v293 = vld [vmem:[%s242 + $0xb8] sm:$0xff]
        %v294 = vld [vmem:[%s242 + $0xc0] sm:$0xff]
        %v295 = vld [vmem:[%s242 + $0xc8] sm:$0xff]
        %v296 = vld [vmem:[%s242 + $0xd0] sm:$0xff]
        %v297 = vld [vmem:[%s242 + $0xd8] sm:$0xff]
        %v298 = vld [vmem:[%s242 + $0xe0] sm:$0xff]
        %v299 = vld [vmem:[%s242 + $0xe8] sm:$0xff]
        %v300 = vld [vmem:[%s242 + $0xf0] sm:$0xff]
        %v301 = vld [vmem:[%s242 + $0xf8] sm:$0xff]
        %302 = vxpose.xlu0.b32.start [1/16] %v270, 128
        %303 = vxpose.xlu0.b32.cont [2/16] %v271, 128
        %304 = vxpose.xlu0.b32.cont [3/16] %v272, 128
        %305 = vxpose.xlu0.b32.cont [4/16] %v273, 128
        %306 = vxpose.xlu0.b32.cont [5/16] %v274, 128
        %307 = vxpose.xlu0.b32.cont [6/16] %v275, 128
        %308 = vxpose.xlu0.b32.cont [7/16] %v276, 128
        %309 = vxpose.xlu0.b32.cont [8/16] %v277, 128
        %310 = vxpose.xlu0.b32.cont [9/16] %v278, 128
        %311 = vxpose.xlu0.b32.cont [10/16] %v279, 128
        %312 = vxpose.xlu0.b32.cont [11/16] %v280, 128
        %313 = vxpose.xlu0.b32.cont [12/16] %v281, 128
        %314 = vxpose.xlu0.b32.cont [13/16] %v282, 128
        %315 = vxpose.xlu0.b32.cont [14/16] %v283, 128
        %316 = vxpose.xlu0.b32.cont [15/16] %v284, 128
        %317 = vxpose.xlu0.b32.end [16/16] %v285, 128
        %v318 = vpop.trf.xlu0
        %v319 = vpop.trf.xlu0
        %v320 = vpop.trf.xlu0
        %v321 = vpop.trf.xlu0
        %v322 = vpop.trf.xlu0
        %v323 = vpop.trf.xlu0
        %v324 = vpop.trf.xlu0
        %v325 = vpop.trf.xlu0
        %v326 = vpop.trf.xlu0
        %v327 = vpop.trf.xlu0
        %v328 = vpop.trf.xlu0
        %v329 = vpop.trf.xlu0
        %v330 = vpop.trf.xlu0
        %v331 = vpop.trf.xlu0
        %v332 = vpop.trf.xlu0
        %v333 = vpop.trf.xlu0
        %334 = vxpose.xlu0.b32.start [1/16] %v286, 128
        %335 = vxpose.xlu0.b32.cont [2/16] %v287, 128
        %336 = vxpose.xlu0.b32.cont [3/16] %v288, 128
        %337 = vxpose.xlu0.b32.cont [4/16] %v289, 128
        %338 = vxpose.xlu0.b32.cont [5/16] %v290, 128
        %339 = vxpose.xlu0.b32.cont [6/16] %v291, 128
        %340 = vxpose.xlu0.b32.cont [7/16] %v292, 128
        %341 = vxpose.xlu0.b32.cont [8/16] %v293, 128
        %342 = vxpose.xlu0.b32.cont [9/16] %v294, 128
        %343 = vxpose.xlu0.b32.cont [10/16] %v295, 128
        %344 = vxpose.xlu0.b32.cont [11/16] %v296, 128
        %345 = vxpose.xlu0.b32.cont [12/16] %v297, 128
        %346 = vxpose.xlu0.b32.cont [13/16] %v298, 128
        %347 = vxpose.xlu0.b32.cont [14/16] %v299, 128
        %348 = vxpose.xlu0.b32.cont [15/16] %v300, 128
        %349 = vxpose.xlu0.b32.end [16/16] %v301, 128
        %v350 = vpop.trf.xlu0
        %v351 = vpop.trf.xlu0
        %v352 = vpop.trf.xlu0
        %v353 = vpop.trf.xlu0
        %v354 = vpop.trf.xlu0
        %v355 = vpop.trf.xlu0
        %v356 = vpop.trf.xlu0
        %v357 = vpop.trf.xlu0
        %v358 = vpop.trf.xlu0
        %v359 = vpop.trf.xlu0
        %v360 = vpop.trf.xlu0
        %v361 = vpop.trf.xlu0
        %v362 = vpop.trf.xlu0
        %v363 = vpop.trf.xlu0
        %v364 = vpop.trf.xlu0
        %v365 = vpop.trf.xlu0
        %v366 = vld [vmem:[%s253] sm:$0xff]
        %v367 = vld [vmem:[%s253 + $0x8] sm:$0xff]
        %v368 = vld [vmem:[%s253 + $0x10] sm:$0xff]
        %v369 = vld [vmem:[%s253 + $0x18] sm:$0xff]
        %v370 = vld [vmem:[%s253 + $0x20] sm:$0xff]
        %v371 = vld [vmem:[%s253 + $0x28] sm:$0xff]
        %v372 = vld [vmem:[%s253 + $0x30] sm:$0xff]
        %v373 = vld [vmem:[%s253 + $0x38] sm:$0xff]
        %v374 = vld [vmem:[%s253 + $0x40] sm:$0xff]
        %v375 = vld [vmem:[%s253 + $0x48] sm:$0xff]
        %v376 = vld [vmem:[%s253 + $0x50] sm:$0xff]
        %v377 = vld [vmem:[%s253 + $0x58] sm:$0xff]
        %v378 = vld [vmem:[%s253 + $0x60] sm:$0xff]
        %v379 = vld [vmem:[%s253 + $0x68] sm:$0xff]
        %v380 = vld [vmem:[%s253 + $0x70] sm:$0xff]
        %v381 = vld [vmem:[%s253 + $0x78] sm:$0xff]
        %v382 = vld [vmem:[%s253 + $0x80] sm:$0xff]
        %v383 = vld [vmem:[%s253 + $0x88] sm:$0xff]
        %v384 = vld [vmem:[%s253 + $0x90] sm:$0xff]
        %v385 = vld [vmem:[%s253 + $0x98] sm:$0xff]
        %v386 = vld [vmem:[%s253 + $0xa0] sm:$0xff]
        %v387 = vld [vmem:[%s253 + $0xa8] sm:$0xff]
        %v388 = vld [vmem:[%s253 + $0xb0] sm:$0xff]
        %v389 = vld [vmem:[%s253 + $0xb8] sm:$0xff]
        %v390 = vld [vmem:[%s253 + $0xc0] sm:$0xff]
        %v391 = vld [vmem:[%s253 + $0xc8] sm:$0xff]
        %v392 = vld [vmem:[%s253 + $0xd0] sm:$0xff]
        %v393 = vld [vmem:[%s253 + $0xd8] sm:$0xff]
        %v394 = vld [vmem:[%s253 + $0xe0] sm:$0xff]
        %v395 = vld [vmem:[%s253 + $0xe8] sm:$0xff]
        %v396 = vld [vmem:[%s253 + $0xf0] sm:$0xff]
        %v397 = vld [vmem:[%s253 + $0xf8] sm:$0xff]
        %v398 = vld [vmem:[%s259] sm:$0xff]
        %v399 = vld [vmem:[%s259 + $0x8] sm:$0xff]
        %v400 = vld [vmem:[%s259 + $0x10] sm:$0xff]
        %v401 = vld [vmem:[%s259 + $0x18] sm:$0xff]
        %v402 = vld [vmem:[%s259 + $0x20] sm:$0xff]
        %v403 = vld [vmem:[%s259 + $0x28] sm:$0xff]
        %v404 = vld [vmem:[%s259 + $0x30] sm:$0xff]
        %v405 = vld [vmem:[%s259 + $0x38] sm:$0xff]
        %v406 = vld [vmem:[%s259 + $0x40] sm:$0xff]
        %v407 = vld [vmem:[%s259 + $0x48] sm:$0xff]
        %v408 = vld [vmem:[%s259 + $0x50] sm:$0xff]
        %v409 = vld [vmem:[%s259 + $0x58] sm:$0xff]
        %v410 = vld [vmem:[%s259 + $0x60] sm:$0xff]
        %v411 = vld [vmem:[%s259 + $0x68] sm:$0xff]
        %v412 = vld [vmem:[%s259 + $0x70] sm:$0xff]
        %v413 = vld [vmem:[%s259 + $0x78] sm:$0xff]
        %v414 = vld [vmem:[%s259 + $0x80] sm:$0xff]
        %v415 = vld [vmem:[%s259 + $0x88] sm:$0xff]
        %v416 = vld [vmem:[%s259 + $0x90] sm:$0xff]
        %v417 = vld [vmem:[%s259 + $0x98] sm:$0xff]
        %v418 = vld [vmem:[%s259 + $0xa0] sm:$0xff]
        %v419 = vld [vmem:[%s259 + $0xa8] sm:$0xff]
        %v420 = vld [vmem:[%s259 + $0xb0] sm:$0xff]
        %v421 = vld [vmem:[%s259 + $0xb8] sm:$0xff]
        %v422 = vld [vmem:[%s259 + $0xc0] sm:$0xff]
        %v423 = vld [vmem:[%s259 + $0xc8] sm:$0xff]
        %v424 = vld [vmem:[%s259 + $0xd0] sm:$0xff]
        %v425 = vld [vmem:[%s259 + $0xd8] sm:$0xff]
        %v426 = vld [vmem:[%s259 + $0xe0] sm:$0xff]
        %v427 = vld [vmem:[%s259 + $0xe8] sm:$0xff]
        %v428 = vld [vmem:[%s259 + $0xf0] sm:$0xff]
        %v429 = vld [vmem:[%s259 + $0xf8] sm:$0xff]
        %v430 = vsub.f32 %v366, %v398
        %v431 = vsub.f32 %v367, %v399
        %v432 = vsub.f32 %v368, %v400
        %v433 = vsub.f32 %v369, %v401
        %v434 = vsub.f32 %v370, %v402
        %v435 = vsub.f32 %v371, %v403
        %v436 = vsub.f32 %v372, %v404
        %v437 = vsub.f32 %v373, %v405
        %v438 = vsub.f32 %v374, %v406
        %v439 = vsub.f32 %v375, %v407
        %v440 = vsub.f32 %v376, %v408
        %v441 = vsub.f32 %v377, %v409
        %v442 = vsub.f32 %v378, %v410
        %v443 = vsub.f32 %v379, %v411
        %v444 = vsub.f32 %v380, %v412
        %v445 = vsub.f32 %v381, %v413
        %v446 = vsub.f32 %v382, %v414
        %v447 = vsub.f32 %v383, %v415
        %v448 = vsub.f32 %v384, %v416
        %v449 = vsub.f32 %v385, %v417
        %v450 = vsub.f32 %v386, %v418
        %v451 = vsub.f32 %v387, %v419
        %v452 = vsub.f32 %v388, %v420
        %v453 = vsub.f32 %v389, %v421
        %v454 = vsub.f32 %v390, %v422
        %v455 = vsub.f32 %v391, %v423
        %v456 = vsub.f32 %v392, %v424
        %v457 = vsub.f32 %v393, %v425
        %v458 = vsub.f32 %v394, %v426
        %v459 = vsub.f32 %v395, %v427
        %v460 = vsub.f32 %v396, %v428
        %v461 = vsub.f32 %v397, %v429
        %462 = vxpose.xlu0.b32.start [1/16] %v430, 128
        %463 = vxpose.xlu0.b32.cont [2/16] %v431, 128
        %464 = vxpose.xlu0.b32.cont [3/16] %v432, 128
        %465 = vxpose.xlu0.b32.cont [4/16] %v433, 128
        %466 = vxpose.xlu0.b32.cont [5/16] %v434, 128
        %467 = vxpose.xlu0.b32.cont [6/16] %v435, 128
        %468 = vxpose.xlu0.b32.cont [7/16] %v436, 128
        %469 = vxpose.xlu0.b32.cont [8/16] %v437, 128
        %470 = vxpose.xlu0.b32.cont [9/16] %v438, 128
        %471 = vxpose.xlu0.b32.cont [10/16] %v439, 128
        %472 = vxpose.xlu0.b32.cont [11/16] %v440, 128
        %473 = vxpose.xlu0.b32.cont [12/16] %v441, 128
        %474 = vxpose.xlu0.b32.cont [13/16] %v442, 128
        %475 = vxpose.xlu0.b32.cont [14/16] %v443, 128
        %476 = vxpose.xlu0.b32.cont [15/16] %v444, 128
        %477 = vxpose.xlu0.b32.end [16/16] %v445, 128
        %v478 = vpop.trf.xlu0
        %v479 = vpop.trf.xlu0
        %v480 = vpop.trf.xlu0
        %v481 = vpop.trf.xlu0
        %v482 = vpop.trf.xlu0
        %v483 = vpop.trf.xlu0
        %v484 = vpop.trf.xlu0
        %v485 = vpop.trf.xlu0
        %v486 = vpop.trf.xlu0
        %v487 = vpop.trf.xlu0
        %v488 = vpop.trf.xlu0
        %v489 = vpop.trf.xlu0
        %v490 = vpop.trf.xlu0
        %v491 = vpop.trf.xlu0
        %v492 = vpop.trf.xlu0
        %v493 = vpop.trf.xlu0
        %494 = vxpose.xlu0.b32.start [1/16] %v446, 128
        %495 = vxpose.xlu0.b32.cont [2/16] %v447, 128
        %496 = vxpose.xlu0.b32.cont [3/16] %v448, 128
        %497 = vxpose.xlu0.b32.cont [4/16] %v449, 128
        %498 = vxpose.xlu0.b32.cont [5/16] %v450, 128
        %499 = vxpose.xlu0.b32.cont [6/16] %v451, 128
        %500 = vxpose.xlu0.b32.cont [7/16] %v452, 128
        %501 = vxpose.xlu0.b32.cont [8/16] %v453, 128
        %502 = vxpose.xlu0.b32.cont [9/16] %v454, 128
        %503 = vxpose.xlu0.b32.cont [10/16] %v455, 128
        %504 = vxpose.xlu0.b32.cont [11/16] %v456, 128
        %505 = vxpose.xlu0.b32.cont [12/16] %v457, 128
        %506 = vxpose.xlu0.b32.cont [13/16] %v458, 128
        %507 = vxpose.xlu0.b32.cont [14/16] %v459, 128
        %508 = vxpose.xlu0.b32.cont [15/16] %v460, 128
        %509 = vxpose.xlu0.b32.end [16/16] %v461, 128
        %v510 = vpop.trf.xlu0
        %v511 = vpop.trf.xlu0
        %v512 = vpop.trf.xlu0
        %v513 = vpop.trf.xlu0
        %v514 = vpop.trf.xlu0
        %v515 = vpop.trf.xlu0
        %v516 = vpop.trf.xlu0
        %v517 = vpop.trf.xlu0
        %v518 = vpop.trf.xlu0
        %v519 = vpop.trf.xlu0
        %v520 = vpop.trf.xlu0
        %v521 = vpop.trf.xlu0
        %v522 = vpop.trf.xlu0
        %v523 = vpop.trf.xlu0
        %v524 = vpop.trf.xlu0
        %v525 = vpop.trf.xlu0
        %v526 = vrot.slane %v318, 4
        %v527 = vmax.f32 %v318, %v526
        %v528 = vrot.slane %v527, 2
        %v529 = vmax.f32 %v527, %v528
        %v530 = vrot.slane %v529, 1
        %v531 = vmax.f32 %v529, %v530
        %v532 = vrot.slane %v350, 4
        %v533 = vmax.f32 %v350, %v532
        %v534 = vrot.slane %v533, 2
        %v535 = vmax.f32 %v533, %v534
        %v536 = vrot.slane %v535, 1
        %v537 = vmax.f32 %v535, %v536
        %v538 = vsub.f32 %v318, %v531
        %v539 = vsub.f32 %v350, %v537
        %v540 = vmul.f32 %v538, 1.442695
        %v541 = vpow.pop %v540
        %v542 = vmul.f32 %v539, 1.442695
        %v543 = vpow.pop %v542
        %v544 = vrot.slane %v541, 4
        %v545 = vadd.f32 %v541, %v544
        %v546 = vrot.slane %v545, 2
        %v547 = vadd.f32 %v545, %v546
        %v548 = vrot.slane %v547, 1
        %v549 = vadd.f32 %v547, %v548
        %v550 = vrot.slane %v543, 4
        %v551 = vadd.f32 %v543, %v550
        %v552 = vrot.slane %v551, 2
        %v553 = vadd.f32 %v551, %v552
        %v554 = vrot.slane %v553, 1
        %v555 = vadd.f32 %v553, %v554
        %v556 = vlog2.pop %v549
        %v557 = vmul.f32 %v556, 0.6931472
        %v558 = vlog2.pop %v555
        %v559 = vmul.f32 %v558, 0.6931472
        %v560 = vadd.f32 %v557, %v531
        %v561 = vadd.f32 %v559, %v537
        %v562 = vld [vmem:[%s247] sm:$0x3]
        %v563 = vlaneseq
        %v564 = vshrl.u32 %v563, 7
        %v565 = vlaneseq
        %v566 = vshrl.u32 %v565, 7
        %v567 = vsub.s32 0, %v566
        %v568 = vrot.slane %v562, %v567
        %v569 = vlaneseq
        %v570 = vshrl.u32 %v569, 7
        %v571 = vsub.s32 1, %v570
        %v572 = vrot.slane %v562, %v571
        %vm573 = vcmp.eq.s32.totalorder %v564, %v568
        %vm574 = vcmp.eq.s32.totalorder %v564, %v572
        %v575 = vsel %vm573, %v318, 0.0
        %v576 = vsel %vm574, %v350, 0.0
        %v577 = vrot.slane %v575, 4
        %v578 = vadd.f32 %v575, %v577
        %v579 = vrot.slane %v578, 2
        %v580 = vadd.f32 %v578, %v579
        %v581 = vrot.slane %v580, 1
        %v582 = vadd.f32 %v580, %v581
        %v583 = vrot.slane %v576, 4
        %v584 = vadd.f32 %v576, %v583
        %v585 = vrot.slane %v584, 2
        %v586 = vadd.f32 %v584, %v585
        %v587 = vrot.slane %v586, 1
        %v588 = vadd.f32 %v586, %v587
        %v589 = vsub.f32 %v560, %v582
        %v590 = vsub.f32 %v561, %v588
        %v591 = vsub.f32 0.0, %v589
        %v592 = vsub.f32 0.0, %v590
        %v593 = vmul.f32 %v591, 1.442695
        %v594 = vpow.pop %v593
        %v595 = vmul.f32 %v592, 1.442695
        %v596 = vpow.pop %v595
        %v597 = vsub.f32 1.0, %v594
        %v598 = vsub.f32 1.0, %v596
        %vm599 = vcmp.ge.s32.totalorder %v562, 0
        %v600 = vsel %vm599, 1, 0
        %v601 = vlaneseq
        %v602 = vshrl.u32 %v601, 7
        %v603 = vsub.s32 0, %v602
        %v604 = vrot.slane %v600, %v603
        %v605 = vlaneseq
        %v606 = vshrl.u32 %v605, 7
        %v607 = vsub.s32 1, %v606
        %v608 = vrot.slane %v600, %v607
        %vm609 = vcmp.ne.s32.totalorder %v604, 0
        %vm610 = vcmp.ne.s32.totalorder %v608, 0
        %vm611 = vmand %vm268, %vm609
        %vm612 = vmand %vm269, %vm610
        %v613 = vmul.f32 %v597, %v597
        %v614 = vmul.f32 %v598, %v598
        %v615 = vmul.f32 %v613, %v589
        %v616 = vmul.f32 %v614, %v590
        %v617 = vsel %vm611, %v615, 0.0
        %v618 = vsel %vm612, %v616, 0.0
        %vm619 = vcmask 1040384
        %v620 = vsel %vm619, %v617, 0.0
        %v621 = vsel %vm619, %v618, 0.0
        %v622 = vadd.f32 %v620, %v621
        %623 = vadd.xlane.f32.xlu0 %v622
        %v624 = vpop.xlane.xlu0 %623
        %v625 = vrot.slane %v624, 4
        %v626 = vadd.f32 %v624, %v625
        %v627 = vrot.slane %v626, 2
        %v628 = vadd.f32 %v626, %v627
        %v629 = vrot.slane %v628, 1
        %v630 = vadd.f32 %v628, %v629
        %s631 = vtos %v630
        %v632 = vand.u32 2147483647, %v478
        %v633 = vand.u32 2147483647, %v510
        %vm634 = vcmp.lt.f32.partialorder %v632, 1.0
        %vm635 = vcmp.lt.f32.partialorder %v633, 1.0
        %v636 = vmul.f32 %v478, 0.5
        %v637 = vmul.f32 %v510, 0.5
        %v638 = vmul.f32 %v636, %v478
        %v639 = vmul.f32 %v637, %v510
        %v640 = vsub.f32 %v632, 0.5
        %v641 = vsub.f32 %v633, 0.5
        %v642 = vsel %vm634, %v638, %v640
        %v643 = vsel %vm635, %v639, %v641
        %v644 = vsel %vm268, 1, 0
        %v645 = vsel %vm269, 1, 0
        %vm646 = vcmp.eq.s32.totalorder %v644, 1
        %vm647 = vcmp.eq.s32.totalorder %v645, 1
        %v648 = vsel %vm646, %v642, 0.0
        %v649 = vsel %vm647, %v643, 0.0
        %vm650 = vcmask 1043456
        %v651 = vsel %vm650, %v648, 0.0
        %v652 = vsel %vm650, %v649, 0.0
        %v653 = vadd.f32 %v651, %v652
        %654 = vadd.xlane.f32.xlu0 %v653
        %v655 = vpop.xlane.xlu0 %654
        %v656 = vrot.slane %v655, 4
        %v657 = vadd.f32 %v655, %v656
        %v658 = vrot.slane %v657, 2
        %v659 = vadd.f32 %v657, %v658
        %v660 = vrot.slane %v659, 1
        %v661 = vadd.f32 %v659, %v660
        %s662 = vtos %v661
        %s663 = smul.f32 %s631, 0.00048828125
        %s664 = smul.f32 %s662, 0.00048828125
        %s665 = sadd.f32 %s663, %s664
        %vm666 = vcmp.eq.s32.totalorder %v564, 0
        %vm667 = vcmp.eq.s32.totalorder %v263, 0
        %vm668 = vmand %vm666, %vm667
        %v669 = vstv %s665
        %v670 = vsel %vm668, %v669, 0.0
        %671 = vst [vmem:[%s237] sm:$0xff] %v670
        %s672 = sand.u32 %s130, 1
        %s673 = scalar_lea.sflag [#allocation3], %s672
        %s674 = sand.u32 %s130, 1
        %s675 = smul.addr %s674, 8
        %s676 = scalar_lea.vmem [#allocation2], %s675
        // Predicated region
        $region37: #{tpu_custom_call.1} parent=35 // pred_check
          %p677 = pneg %p140
        $region38: #{tpu_custom_call.1} parent=35 // pred_check_branch
          %679 = sbr.rel (%p677) target = $region40
        $region39: #{tpu_custom_call.1} parent=35 // pred_region
          %s681 = ssub.s32 128, 128
          %682 = vsyncadd %s673, %s681
          %s683 = smul.addr %s18, 128
          %s684 = scalar_lea.hbm %s4, %s683
          %s686 = sshll.u32 %s676, 4
          %s687 = int_to_ptr.vmem [resolvable:$true] %s686
          %689 = dma.vmem_to_hbm [thread:$0]  %s687, 128, %s684, %s673
        $region40: #{tpu_custom_call.1} parent=35 // pred_fallthru
          _
      $region36: #{tpu_custom_call.1} parent=5 // pred_fallthru
        _
      %p690 = scmp.le.s32.totalorder 2, %s13
      // Predicated region
      $region41: #{tpu_custom_call.1} parent=5 // pred_check
        %p691 = pneg %p690
      $region42: #{tpu_custom_call.1} parent=5 // pred_check_branch
        %693 = sbr.rel (%p691) target = $region44
      $region43: #{tpu_custom_call.1} parent=5 // pred_region
        %s694 = ssub.s32 %s13, 2
        // Predicated region
        $region45: #{tpu_custom_call.1} parent=43 // pred_check
          %p695 = pneg %p146
        $region46: #{tpu_custom_call.1} parent=43 // pred_check_branch
          %697 = sbr.rel (%p695) target = $region48
        $region47: #{tpu_custom_call.1} parent=43 // pred_region
          %s698 = sand.u32 %s131, 1
          %s699 = scalar_lea.sflag [#allocation3], %s698
          %s700 = sand.u32 %s131, 1
          %s701 = smul.addr %s700, 8
          %s702 = scalar_lea.vmem [#allocation2], %s701
          %703 = dma.done %s699, 128
        $region48: #{tpu_custom_call.1} parent=43 // pred_fallthru
          _
      $region44: #{tpu_custom_call.1} parent=5 // pred_fallthru
        _
    $region6: #{tpu_custom_call.1} parent=1 // loop_footer
      %s17 = sadd.s32 1, %s13
    $region7: #{tpu_custom_call.1} parent=1 // loop_footer_branch
      %12 = sbr.rel target = $region3
    $region8: #{tpu_custom_call.1} parent=1 // loop_exit
      _
    %704 = vsyncpa [#allocation3], 1
    %s705 = scalar_lea.sflag [#allocation3], 1
    %706 = vsyncpa %s705, 1

// kernel: tpu_custom_call.1
$region0: #{tpu_custom_call.1}
  #allocation0 [shape = 'u32[]', space=smem, size = 0x4, offset = 0x4, fixed_abs, tag = 'smem constant byte address 0x4 - core index']
  #allocation1 [shape = 'u32[144,128]{1,0:T(1,128)}', space=vmem, size = 0x12000, scoped, tag = 'internal scratch']
  %s0 = inlined_call_operand.hbm [shape: f32[8,512], index: 0, kind: input, shape index: {}]
  %s1 = inlined_call_operand.hbm [shape: s32[1,512], index: 1, kind: input, shape index: {}]
  %s2 = inlined_call_operand.hbm [shape: f32[4,512], index: 2, kind: input, shape index: {}]
  %s3 = inlined_call_operand.hbm [shape: f32[4,512], index: 3, kind: input, shape index: {}]
  %s4 = inlined_call_operand.hbm [shape: f32[16,128], index: 4, kind: output, shape index: {}]
  %s5 = sld [smem:[#allocation0]]
  $region65: #{tpu_custom_call.1} parent=0
    _
  %s7 = ssub.s32 1, %s5
  %s8 = scalar_select 0, %s7, %s5
  $region1: #{tpu_custom_call.1} parent=0
    #allocation2 [shape = 'u8[16384]{0}', space=vmem, size = 0x4000, scoped, tag = 'input window, operand 0']
    #allocation3 [shape = 's32[2]{0}', space=sflag, size = 0x8, scoped, tag = 'scoped memory for tpu_custom_call.1']
    #allocation4 [shape = 's32[2]{0}', space=sflag, size = 0x8, scoped, tag = 'scoped memory for tpu_custom_call.1']
    #allocation5 [shape = 'u8[2048]{0}', space=vmem, size = 0x800, scoped, tag = 'input window, operand 1']
    #allocation6 [shape = 's32[2]{0}', space=sflag, size = 0x8, scoped, tag = 'scoped memory for tpu_custom_call.1']
    #allocation7 [shape = 'u8[8192]{0}', space=vmem, size = 0x2000, scoped, tag = 'input window, operand 2']
    #allocation8 [shape = 'u8[8192]{0}', space=vmem, size = 0x2000, scoped, tag = 'input window, operand 3']
    #allocation9 [shape = 's32[2]{0}', space=sflag, size = 0x8, scoped, tag = 'scoped memory for tpu_custom_call.1']
    #allocation10 [shape = 'u8[8192]{0}', space=vmem, size = 0x2000, scoped, tag = 'output window, operand 0']
    %9 = vsyncpa [#allocation3], 0
    %s10 = scalar_lea.sflag [#allocation3], 1
    %11 = vsyncpa %s10, 0
    %12 = vsyncpa [#allocation6], 0
    %s13 = scalar_lea.sflag [#allocation6], 1
    %14 = vsyncpa %s13, 0
    %15 = vsyncpa [#allocation9], 0
    %s16 = scalar_lea.sflag [#allocation9], 1
    %17 = vsyncpa %s16, 0
    %18 = vsyncpa [#allocation4], 0
    %s19 = scalar_lea.sflag [#allocation4], 1
    %20 = vsyncpa %s19, 0
    loop: start=0, step=1, limit=4
    $region2: #{tpu_custom_call.1} parent=1 // loop_pre_header
      _
    $region3: #{tpu_custom_call.1} parent=1 // loop_header
      %s22 = sphi 0, %s26
      %p23 = scmp.ge.s32.totalorder %s22, 4
      %s32 = sphi 0, %s34
      %s35 = sphi 0, %s32
      %s36 = sphi 0, %s35
      %s52 = sphi 0, %s36
      %s58 = sphi 0, %s60
      %s61 = sphi 0, %s58
      %s62 = sphi 0, %s61
      %s78 = sphi 0, %s62
      %s84 = sphi 0, %s86
      %s87 = sphi 0, %s84
      %s88 = sphi 0, %s87
      %s104 = sphi 0, %s88
      %s110 = sphi 0, %s112
      %s113 = sphi 0, %s110
      %s114 = sphi 0, %s113
      %s130 = sphi 0, %s114
      %s136 = sphi 0, %s138
      %s139 = sphi 0, %s136
      %s140 = sphi 0, %s139
      %s156 = sphi 0, %s140
    $region4: #{tpu_custom_call.1} parent=1 // loop_header_branch
      %25 = sbr.rel (%p23) target = $region8
    $region5: #{tpu_custom_call.1} parent=1 // loop_body
      %s27 = ssub.s32 %s22, 1
      %s28 = ssub.s32 %s22, 2
      %s29 = sadd.s32 %s22, 1
      %s30 = ssub.s32 %s22, %s29
      %p31 = scmp.eq.s32.totalorder %s30, 0
      %s33 = sadd.s32 %s32, 1
      %s34 = scalar_select %p31, %s32, %s33
      %p37 = pneg %p31
      %p38 = scmp.eq.s32.totalorder %s22, 1
      %p39 = por %p37, %p38
      %p40 = scmp.ne.s32.totalorder %s32, %s35
      %p41 = scmp.eq.s32.totalorder %s22, 0
      %p42 = por %p40, %p41
      %p43 = scmp.ne.s32.totalorder %s32, %s35
      %p44 = scmp.eq.s32.totalorder %s27, 1
      %p45 = por %p43, %p44
      %p46 = scmp.ne.s32.totalorder %s35, %s36
      %p47 = scmp.eq.s32.totalorder %s27, 0
      %p48 = por %p46, %p47
      %p49 = scmp.ne.s32.totalorder %s35, %s36
      %p50 = scmp.eq.s32.totalorder %s28, 1
      %p51 = por %p49, %p50
      %p53 = scmp.ne.s32.totalorder %s36, %s52
      %p54 = scmp.eq.s32.totalorder %s28, 0
      %p55 = por %p53, %p54
      %s56 = ssub.s32 %s22, %s29
      %p57 = scmp.eq.s32.totalorder %s56, 0
      %s59 = sadd.s32 %s58, 1
      %s60 = scalar_select %p57, %s58, %s59
      %p63 = pneg %p57
      %p64 = scmp.eq.s32.totalorder %s22, 1
      %p65 = por %p63, %p64
      %p66 = scmp.ne.s32.totalorder %s58, %s61
      %p67 = scmp.eq.s32.totalorder %s22, 0
      %p68 = por %p66, %p67
      %p69 = scmp.ne.s32.totalorder %s58, %s61
      %p70 = scmp.eq.s32.totalorder %s27, 1
      %p71 = por %p69, %p70
      %p72 = scmp.ne.s32.totalorder %s61, %s62
      %p73 = scmp.eq.s32.totalorder %s27, 0
      %p74 = por %p72, %p73
      %p75 = scmp.ne.s32.totalorder %s61, %s62
      %p76 = scmp.eq.s32.totalorder %s28, 1
      %p77 = por %p75, %p76
      %p79 = scmp.ne.s32.totalorder %s62, %s78
      %p80 = scmp.eq.s32.totalorder %s28, 0
      %p81 = por %p79, %p80
      %s82 = ssub.s32 %s22, %s29
      %p83 = scmp.eq.s32.totalorder %s82, 0
      %s85 = sadd.s32 %s84, 1
      %s86 = scalar_select %p83, %s84, %s85
      %p89 = pneg %p83
      %p90 = scmp.eq.s32.totalorder %s22, 1
      %p91 = por %p89, %p90
      %p92 = scmp.ne.s32.totalorder %s84, %s87
      %p93 = scmp.eq.s32.totalorder %s22, 0
      %p94 = por %p92, %p93
      %p95 = scmp.ne.s32.totalorder %s84, %s87
      %p96 = scmp.eq.s32.totalorder %s27, 1
      %p97 = por %p95, %p96
      %p98 = scmp.ne.s32.totalorder %s87, %s88
      %p99 = scmp.eq.s32.totalorder %s27, 0
      %p100 = por %p98, %p99
      %p101 = scmp.ne.s32.totalorder %s87, %s88
      %p102 = scmp.eq.s32.totalorder %s28, 1
      %p103 = por %p101, %p102
      %p105 = scmp.ne.s32.totalorder %s88, %s104
      %p106 = scmp.eq.s32.totalorder %s28, 0
      %p107 = por %p105, %p106
      %s108 = ssub.s32 %s22, %s29
      %p109 = scmp.eq.s32.totalorder %s108, 0
      %s111 = sadd.s32 %s110, 1
      %s112 = scalar_select %p109, %s110, %s111
      %p115 = pneg %p109
      %p116 = scmp.eq.s32.totalorder %s22, 1
      %p117 = por %p115, %p116
      %p118 = scmp.ne.s32.totalorder %s110, %s113
      %p119 = scmp.eq.s32.totalorder %s22, 0
      %p120 = por %p118, %p119
      %p121 = scmp.ne.s32.totalorder %s110, %s113
      %p122 = scmp.eq.s32.totalorder %s27, 1
      %p123 = por %p121, %p122
      %p124 = scmp.ne.s32.totalorder %s113, %s114
      %p125 = scmp.eq.s32.totalorder %s27, 0
      %p126 = por %p124, %p125
      %p127 = scmp.ne.s32.totalorder %s113, %s114
      %p128 = scmp.eq.s32.totalorder %s28, 1
      %p129 = por %p127, %p128
      %p131 = scmp.ne.s32.totalorder %s114, %s130
      %p132 = scmp.eq.s32.totalorder %s28, 0
      %p133 = por %p131, %p132
      %s134 = ssub.s32 %s22, %s29
      %p135 = scmp.eq.s32.totalorder %s134, 0
      %s137 = sadd.s32 %s136, 1
      %s138 = scalar_select %p135, %s136, %s137
      %p141 = pneg %p135
      %p142 = scmp.eq.s32.totalorder %s22, 1
      %p143 = por %p141, %p142
      %p144 = scmp.ne.s32.totalorder %s136, %s139
      %p145 = scmp.eq.s32.totalorder %s22, 0
      %p146 = por %p144, %p145
      %p147 = scmp.ne.s32.totalorder %s136, %s139
      %p148 = scmp.eq.s32.totalorder %s27, 1
      %p149 = por %p147, %p148
      %p150 = scmp.ne.s32.totalorder %s139, %s140
      %p151 = scmp.eq.s32.totalorder %s27, 0
      %p152 = por %p150, %p151
      %p153 = scmp.ne.s32.totalorder %s139, %s140
      %p154 = scmp.eq.s32.totalorder %s28, 1
      %p155 = por %p153, %p154
      %p157 = scmp.ne.s32.totalorder %s140, %s156
      %p158 = scmp.eq.s32.totalorder %s28, 0
      %p159 = por %p157, %p158
      %p160 = scmp.le.s32.totalorder 1, %s22
      %p161 = scmp.lt.s32.totalorder %s22, 3
      %p162 = pnand %p160, %p161
      %p163 = pneg %p162
      // Predicated region
      $region9: #{tpu_custom_call.1} parent=5 // pred_check
        _
      $region10: #{tpu_custom_call.1} parent=5 // pred_check_branch
        %165 = sbr.rel (%p162) target = $region12
      $region11: #{tpu_custom_call.1} parent=5 // pred_region
        %s166 = ssub.s32 %s22, 1
      $region12: #{tpu_custom_call.1} parent=5 // pred_fallthru
        _
      %p167 = scmp.lt.s32.totalorder %s22, 2
      // Predicated region
      $region13: #{tpu_custom_call.1} parent=5 // pred_check
        %p168 = pneg %p167
      $region14: #{tpu_custom_call.1} parent=5 // pred_check_branch
        %170 = sbr.rel (%p168) target = $region16
      $region15: #{tpu_custom_call.1} parent=5 // pred_region
        // Predicated region
        $region17: #{tpu_custom_call.1} parent=15 // pred_check
          %p171 = pneg %p42
        $region18: #{tpu_custom_call.1} parent=15 // pred_check_branch
          %173 = sbr.rel (%p171) target = $region20
        $region19: #{tpu_custom_call.1} parent=15 // pred_region
          %s174 = sand.u32 %s32, 1
          %s175 = scalar_lea.sflag [#allocation3], %s174
          %s176 = sand.u32 %s32, 1
          %s177 = smul.addr %s176, 16
          %s178 = scalar_lea.vmem [#allocation2], %s177
          %s179 = smul.u32 2, %s22
          %s181 = ssub.s32 256, 256
          %182 = vsyncadd %s175, %s181
          %s183 = smul.addr %s179, 128
          %s184 = scalar_lea.hbm %s0, %s183
          %s186 = sshll.u32 %s178, 4
          %s187 = int_to_ptr.vmem [resolvable:$true] %s186
          %189 = dma.hbm_to_vmem [thread:$0]  %s184, 256, %s187, %s175
        $region20: #{tpu_custom_call.1} parent=15 // pred_fallthru
          _
        // Predicated region
        $region21: #{tpu_custom_call.1} parent=15 // pred_check
          %p190 = pneg %p68
        $region22: #{tpu_custom_call.1} parent=15 // pred_check_branch
          %192 = sbr.rel (%p190) target = $region24
        $region23: #{tpu_custom_call.1} parent=15 // pred_region
          %s193 = sand.u32 %s22, 1
          %s194 = scalar_lea.sflag [#allocation6], %s193
          %s195 = sand.u32 %s58, 1
          %s196 = smul.addr %s195, 2
          %s197 = scalar_lea.vmem [#allocation5], %s196
          %s198 = smul.u32 2, %s22
          %s200 = ssub.s32 32, 32
          %201 = vsyncadd %s194, %s200
          %s202 = smul.addr %s198, 16
          %s203 = scalar_lea.hbm %s1, %s202
          %s205 = sshll.u32 %s197, 4
          %s206 = int_to_ptr.vmem [resolvable:$true] %s205
          %208 = dma.hbm_to_vmem [thread:$0]  %s203, 32, %s206, %s194
        $region24: #{tpu_custom_call.1} parent=15 // pred_fallthru
          _
        // Predicated region
        $region25: #{tpu_custom_call.1} parent=15 // pred_check
          %p209 = pneg %p94
        $region26: #{tpu_custom_call.1} parent=15 // pred_check_branch
          %211 = sbr.rel (%p209) target = $region28
        $region27: #{tpu_custom_call.1} parent=15 // pred_region
          %s212 = sand.u32 %s22, 1
          %s213 = scalar_lea.sflag [#allocation6], %s212
          %s214 = sand.u32 %s84, 1
          %s215 = smul.addr %s214, 8
          %s216 = scalar_lea.vmem [#allocation7], %s215
          %s217 = smul.u32 2, %s22
          %s219 = ssub.s32 128, 128
          %220 = vsyncadd %s213, %s219
          %s221 = smul.addr %s217, 64
          %s222 = scalar_lea.hbm %s2, %s221
          %s224 = sshll.u32 %s216, 4
          %s225 = int_to_ptr.vmem [resolvable:$true] %s224
          %227 = dma.hbm_to_vmem [thread:$0]  %s222, 128, %s225, %s213
        $region28: #{tpu_custom_call.1} parent=15 // pred_fallthru
          _
        // Predicated region
        $region29: #{tpu_custom_call.1} parent=15 // pred_check
          %p228 = pneg %p120
        $region30: #{tpu_custom_call.1} parent=15 // pred_check_branch
          %230 = sbr.rel (%p228) target = $region32
        $region31: #{tpu_custom_call.1} parent=15 // pred_region
          %s231 = sand.u32 %s110, 1
          %s232 = scalar_lea.sflag [#allocation9], %s231
          %s233 = sand.u32 %s110, 1
          %s234 = smul.addr %s233, 8
          %s235 = scalar_lea.vmem [#allocation8], %s234
          %s236 = smul.u32 2, %s22
          %s238 = ssub.s32 128, 128
          %239 = vsyncadd %s232, %s238
          %s240 = smul.addr %s236, 64
          %s241 = scalar_lea.hbm %s3, %s240
          %s243 = sshll.u32 %s235, 4
          %s244 = int_to_ptr.vmem [resolvable:$true] %s243
          %246 = dma.hbm_to_vmem [thread:$0]  %s241, 128, %s244, %s232
        $region32: #{tpu_custom_call.1} parent=15 // pred_fallthru
          _
      $region16: #{tpu_custom_call.1} parent=5 // pred_fallthru
        _
      %p247 = scmp.le.s32.totalorder 1, %s22
      %p248 = scmp.lt.s32.totalorder %s22, 3
      %p249 = pnand %p247, %p248
      %p250 = pneg %p249
      // Predicated region
      $region33: #{tpu_custom_call.1} parent=5 // pred_check
        _
      $region34: #{tpu_custom_call.1} parent=5 // pred_check_branch
        %252 = sbr.rel (%p249) target = $region36
      $region35: #{tpu_custom_call.1} parent=5 // pred_region
        %s253 = ssub.s32 %s22, 1
        %s254 = sand.u32 %s35, 1
        %s255 = scalar_lea.sflag [#allocation3], %s254
        %s256 = sand.u32 %s35, 1
        %s257 = smul.addr %s256, 16
        %s258 = scalar_lea.vmem [#allocation2], %s257
        // Predicated region
        $region37: #{tpu_custom_call.1} parent=35 // pred_check
          %p259 = pneg %p48
        $region38: #{tpu_custom_call.1} parent=35 // pred_check_branch
          %261 = sbr.rel (%p259) target = $region40
        $region39: #{tpu_custom_call.1} parent=35 // pred_region
          %262 = dma.done %s255, 256
        $region40: #{tpu_custom_call.1} parent=35 // pred_fallthru
          _
        %s263 = sand.u32 %s27, 1
        %s264 = scalar_lea.sflag [#allocation6], %s263
        %s265 = sand.u32 %s61, 1
        %s266 = smul.addr %s265, 2
        %s267 = scalar_lea.vmem [#allocation5], %s266
        // Predicated region
        $region41: #{tpu_custom_call.1} parent=35 // pred_check
          %p268 = pneg %p74
        $region42: #{tpu_custom_call.1} parent=35 // pred_check_branch
          %270 = sbr.rel (%p268) target = $region44
        $region43: #{tpu_custom_call.1} parent=35 // pred_region
          %271 = dma.done %s264, 32
        $region44: #{tpu_custom_call.1} parent=35 // pred_fallthru
          _
        %s272 = sand.u32 %s27, 1
        %s273 = scalar_lea.sflag [#allocation6], %s272
        %s274 = sand.u32 %s87, 1
        %s275 = smul.addr %s274, 8
        %s276 = scalar_lea.vmem [#allocation7], %s275
        // Predicated region
        $region45: #{tpu_custom_call.1} parent=35 // pred_check
          %p277 = pneg %p100
        $region46: #{tpu_custom_call.1} parent=35 // pred_check_branch
          %279 = sbr.rel (%p277) target = $region48
        $region47: #{tpu_custom_call.1} parent=35 // pred_region
          %280 = dma.done %s273, 128
        $region48: #{tpu_custom_call.1} parent=35 // pred_fallthru
          _
        %s281 = sand.u32 %s113, 1
        %s282 = scalar_lea.sflag [#allocation9], %s281
        %s283 = sand.u32 %s113, 1
        %s284 = smul.addr %s283, 8
        %s285 = scalar_lea.vmem [#allocation8], %s284
        // Predicated region
        $region49: #{tpu_custom_call.1} parent=35 // pred_check
          %p286 = pneg %p126
        $region50: #{tpu_custom_call.1} parent=35 // pred_check_branch
          %288 = sbr.rel (%p286) target = $region52
        $region51: #{tpu_custom_call.1} parent=35 // pred_region
          %289 = dma.done %s282, 128
        $region52: #{tpu_custom_call.1} parent=35 // pred_fallthru
          _
        %s290 = sand.u32 %s35, 1
        %s291 = scalar_lea.sflag [#allocation3], %s290
        %s292 = sand.u32 %s35, 1
        %s293 = smul.addr %s292, 16
        %s294 = scalar_lea.vmem [#allocation2], %s293
        %p295 = pneg %p48
        %p296 = pneg %p45
        %s297 = sand.u32 %s27, 1
        %s298 = scalar_lea.sflag [#allocation6], %s297
        %s299 = sand.u32 %s61, 1
        %s300 = smul.addr %s299, 2
        %s301 = scalar_lea.vmem [#allocation5], %s300
        %p302 = pneg %p74
        %p303 = pneg %p71
        %s304 = sand.u32 %s27, 1
        %s305 = scalar_lea.sflag [#allocation6], %s304
        %s306 = sand.u32 %s87, 1
        %s307 = smul.addr %s306, 8
        %s308 = scalar_lea.vmem [#allocation7], %s307
        %p309 = pneg %p100
        %p310 = pneg %p97
        %s311 = sand.u32 %s113, 1
        %s312 = scalar_lea.sflag [#allocation9], %s311
        %s313 = sand.u32 %s113, 1
        %s314 = smul.addr %s313, 8
        %s315 = scalar_lea.vmem [#allocation8], %s314
        %p316 = pneg %p126
        %p317 = pneg %p123
        %p318 = pneg %p152
        %p319 = pneg %p149
        %s320 = sand.u32 %s139, 1
        %s321 = scalar_lea.sflag [#allocation4], %s320
        %s322 = sand.u32 %s139, 1
        %s323 = smul.addr %s322, 8
        %s324 = scalar_lea.vmem [#allocation10], %s323
        %s325 = smul.u32 2, %s27
        %s326 = smul.u32 2, %s27
        %s327 = smul.u32 2, %s27
        %s328 = smul.u32 2, %s27
        %s329 = smul.u32 %s27, 256
        %v330 = vlaneseq
        %v331 = vand.u32 %v330, 127
        %v332 = vadd.s32 %v331, 128
        %v333 = vstv %s329
        %v334 = vadd.s32 %v333, %v331
        %v335 = vadd.s32 %v333, %v332
        %vm336 = vcmp.lt.s32.totalorder %v334, 512
        %vm337 = vcmp.lt.s32.totalorder %v335, 512
        %v338 = vld [vmem:[%s258] sm:$0xff]
        %v339 = vld [vmem:[%s258 + $0x8] sm:$0xff]
        %v340 = vld [vmem:[%s276] sm:$0xff]
        %v341 = vld [vmem:[%s285] sm:$0xff]
        %v342 = vsub.f32 %v340, %v341
        %v343 = vrot.slane %v338, 4
        %v344 = vmax.f32 %v338, %v343
        %v345 = vrot.slane %v344, 2
        %v346 = vmax.f32 %v344, %v345
        %v347 = vrot.slane %v346, 1
        %v348 = vmax.f32 %v346, %v347
        %v349 = vrot.slane %v339, 4
        %v350 = vmax.f32 %v339, %v349
        %v351 = vrot.slane %v350, 2
        %v352 = vmax.f32 %v350, %v351
        %v353 = vrot.slane %v352, 1
        %v354 = vmax.f32 %v352, %v353
        %v355 = vsub.f32 %v338, %v348
        %v356 = vsub.f32 %v339, %v354
        %v357 = vmul.f32 %v355, 1.442695
        %v358 = vpow.pop %v357
        %v359 = vmul.f32 %v356, 1.442695
        %v360 = vpow.pop %v359
        %v361 = vrot.slane %v358, 4
        %v362 = vadd.f32 %v358, %v361
        %v363 = vrot.slane %v362, 2
        %v364 = vadd.f32 %v362, %v363
        %v365 = vrot.slane %v364, 1
        %v366 = vadd.f32 %v364, %v365
        %v367 = vrot.slane %v360, 4
        %v368 = vadd.f32 %v360, %v367
        %v369 = vrot.slane %v368, 2
        %v370 = vadd.f32 %v368, %v369
        %v371 = vrot.slane %v370, 1
        %v372 = vadd.f32 %v370, %v371
        %v373 = vlog2.pop %v366
        %v374 = vmul.f32 %v373, 0.6931472
        %v375 = vlog2.pop %v372
        %v376 = vmul.f32 %v375, 0.6931472
        %v377 = vadd.f32 %v374, %v348
        %v378 = vadd.f32 %v376, %v354
        %v379 = vld [vmem:[%s267] sm:$0x3]
        %v380 = vlaneseq
        %v381 = vshrl.u32 %v380, 7
        %v382 = vlaneseq
        %v383 = vshrl.u32 %v382, 7
        %v384 = vsub.s32 0, %v383
        %v385 = vrot.slane %v379, %v384
        %v386 = vlaneseq
        %v387 = vshrl.u32 %v386, 7
        %v388 = vsub.s32 1, %v387
        %v389 = vrot.slane %v379, %v388
        %vm390 = vcmp.eq.s32.totalorder %v381, %v385
        %vm391 = vcmp.eq.s32.totalorder %v381, %v389
        %v392 = vsel %vm390, %v338, 0.0
        %v393 = vsel %vm391, %v339, 0.0
        %v394 = vrot.slane %v392, 4
        %v395 = vadd.f32 %v392, %v394
        %v396 = vrot.slane %v395, 2
        %v397 = vadd.f32 %v395, %v396
        %v398 = vrot.slane %v397, 1
        %v399 = vadd.f32 %v397, %v398
        %v400 = vrot.slane %v393, 4
        %v401 = vadd.f32 %v393, %v400
        %v402 = vrot.slane %v401, 2
        %v403 = vadd.f32 %v401, %v402
        %v404 = vrot.slane %v403, 1
        %v405 = vadd.f32 %v403, %v404
        %v406 = vsub.f32 %v377, %v399
        %v407 = vsub.f32 %v378, %v405
        %v408 = vsub.f32 0.0, %v406
        %v409 = vsub.f32 0.0, %v407
        %v410 = vmul.f32 %v408, 1.442695
        %v411 = vpow.pop %v410
        %v412 = vmul.f32 %v409, 1.442695
        %v413 = vpow.pop %v412
        %v414 = vsub.f32 1.0, %v411
        %v415 = vsub.f32 1.0, %v413
        %vm416 = vcmp.ge.s32.totalorder %v379, 0
        %v417 = vsel %vm416, 1, 0
        %v418 = vlaneseq
        %v419 = vshrl.u32 %v418, 7
        %v420 = vsub.s32 0, %v419
        %v421 = vrot.slane %v417, %v420
        %v422 = vlaneseq
        %v423 = vshrl.u32 %v422, 7
        %v424 = vsub.s32 1, %v423
        %v425 = vrot.slane %v417, %v424
        %vm426 = vcmp.ne.s32.totalorder %v421, 0
        %vm427 = vcmp.ne.s32.totalorder %v425, 0
        %vm428 = vmand %vm336, %vm426
        %vm429 = vmand %vm337, %vm427
        %v430 = vmul.f32 %v414, %v414
        %v431 = vmul.f32 %v415, %v415
        %v432 = vmul.f32 %v430, %v406
        %v433 = vmul.f32 %v431, %v407
        %v434 = vsel %vm428, %v432, 0.0
        %v435 = vsel %vm429, %v433, 0.0
        %vm436 = vcmask 1040384
        %v437 = vsel %vm436, %v434, 0.0
        %v438 = vsel %vm436, %v435, 0.0
        %v439 = vadd.f32 %v437, %v438
        %440 = vadd.xlane.f32.xlu0 %v439
        %v441 = vpop.xlane.xlu0 %440
        %v442 = vrot.slane %v441, 4
        %v443 = vadd.f32 %v441, %v442
        %v444 = vrot.slane %v443, 2
        %v445 = vadd.f32 %v443, %v444
        %v446 = vrot.slane %v445, 1
        %v447 = vadd.f32 %v445, %v446
        %s448 = vtos %v447
        %v449 = vand.u32 2147483647, %v342
        %vm450 = vcmp.lt.f32.partialorder %v449, 1.0
        %v451 = vmul.f32 %v342, 0.5
        %v452 = vmul.f32 %v451, %v342
        %v453 = vsub.f32 %v449, 0.5
        %v454 = vsel %vm450, %v452, %v453
        %v455 = vsel %vm336, 1, 0
        %v456 = vsel %vm337, 1, 0
        %vm457 = vcmp.eq.s32.totalorder %v455, 1
        %vm458 = vcmp.eq.s32.totalorder %v456, 1
        %v460 = vcombine.high %v454, %v454
        %v462 = vsel %vm457, %v454, 0.0
        %v463 = vsel %vm458, %v460, 0.0
        %vm464 = vcmask 1043456
        %v465 = vsel %vm464, %v462, 0.0
        %v466 = vsel %vm464, %v463, 0.0
        %v467 = vadd.f32 %v465, %v466
        %468 = vadd.xlane.f32.xlu0 %v467
        %v469 = vpop.xlane.xlu0 %468
        %v470 = vrot.slane %v469, 4
        %v471 = vadd.f32 %v469, %v470
        %v472 = vrot.slane %v471, 2
        %v473 = vadd.f32 %v471, %v472
        %v474 = vrot.slane %v473, 1
        %v475 = vadd.f32 %v473, %v474
        %s476 = vtos %v475
        %s477 = smul.f32 %s448, 0.00048828125
        %s478 = smul.f32 %s476, 0.00048828125
        %s479 = sadd.f32 %s477, %s478
        %vm480 = vcmp.eq.s32.totalorder %v381, 0
        %vm481 = vcmp.eq.s32.totalorder %v331, 0
        %vm482 = vmand %vm480, %vm481
        %v483 = vstv %s479
        %v484 = vsel %vm482, %v483, 0.0
        %485 = vst [vmem:[%s324] sm:$0xff] %v484
        %s486 = sand.u32 %s139, 1
        %s487 = scalar_lea.sflag [#allocation4], %s486
        %s488 = sand.u32 %s139, 1
        %s489 = smul.addr %s488, 8
        %s490 = scalar_lea.vmem [#allocation10], %s489
        // Predicated region
        $region53: #{tpu_custom_call.1} parent=35 // pred_check
          %p491 = pneg %p149
        $region54: #{tpu_custom_call.1} parent=35 // pred_check_branch
          %493 = sbr.rel (%p491) target = $region56
        $region55: #{tpu_custom_call.1} parent=35 // pred_region
          %s495 = ssub.s32 128, 128
          %496 = vsyncadd %s487, %s495
          %s497 = smul.addr %s27, 128
          %s498 = scalar_lea.hbm %s4, %s497
          %s500 = sshll.u32 %s490, 4
          %s501 = int_to_ptr.vmem [resolvable:$true] %s500
          %503 = dma.vmem_to_hbm [thread:$0]  %s501, 128, %s498, %s487
        $region56: #{tpu_custom_call.1} parent=35 // pred_fallthru
          _
      $region36: #{tpu_custom_call.1} parent=5 // pred_fallthru
        _
      %p504 = scmp.le.s32.totalorder 2, %s22
      // Predicated region
      $region57: #{tpu_custom_call.1} parent=5 // pred_check
        %p505 = pneg %p504
      $region58: #{tpu_custom_call.1} parent=5 // pred_check_branch
        %507 = sbr.rel (%p505) target = $region60
      $region59: #{tpu_custom_call.1} parent=5 // pred_region
        %s508 = ssub.s32 %s22, 2
        // Predicated region
        $region61: #{tpu_custom_call.1} parent=59 // pred_check
          %p509 = pneg %p155
        $region62: #{tpu_custom_call.1} parent=59 // pred_check_branch
          %511 = sbr.rel (%p509) target = $region64
        $region63: #{tpu_custom_call.1} parent=59 // pred_region
          %s512 = sand.u32 %s140, 1
          %s513 = scalar_lea.sflag [#allocation4], %s512
          %s514 = sand.u32 %s140, 1
          %s515 = smul.addr %s514, 8
          %s516 = scalar_lea.vmem [#allocation10], %s515
          %517 = dma.done %s513, 128
        $region64: #{tpu_custom_call.1} parent=59 // pred_fallthru
          _
      $region60: #{tpu_custom_call.1} parent=5 // pred_fallthru
        _
    $region6: #{tpu_custom_call.1} parent=1 // loop_footer
      %s26 = sadd.s32 1, %s22
    $region7: #{tpu_custom_call.1} parent=1 // loop_footer_branch
      %21 = sbr.rel target = $region3
    $region8: #{tpu_custom_call.1} parent=1 // loop_exit
      _
    %518 = vsyncpa [#allocation3], 1
    %s519 = scalar_lea.sflag [#allocation3], 1
    %520 = vsyncpa %s519, 1
    %521 = vsyncpa [#allocation6], 1
    %s522 = scalar_lea.sflag [#allocation6], 1
    %523 = vsyncpa %s522, 1
    %524 = vsyncpa [#allocation9], 1
    %s525 = scalar_lea.sflag [#allocation9], 1
    %526 = vsyncpa %s525, 1
    %527 = vsyncpa [#allocation4], 1
    %s528 = scalar_lea.sflag [#allocation4], 1
    %529 = vsyncpa %s528, 1

</llo_original>
